<compile_context>
chip_gen: v7x
topology: tpu7x:2x2x1
jax: 0.10.0
libtpu: 0.0.40
codegen_flags: <defaults>
</compile_context>

<pallas_src>
import functools

import jax
import jax.numpy as jnp
from jax import lax
from jax.experimental import pallas as pl
from jax.experimental.pallas import tpu as pltpu


NUM_CLASSES = 10
LANE = 128  # lane-dense padding for the head output


# ----------------------------- host-side constants --------------------------

def _make_padding_masks(height, width):
    """(9, 1, H*W) f32 validity masks for the 3x3 SAME-padding taps (k = ky*3 + kx)."""
    hw = height * width
    pos = jnp.arange(hw, dtype=jnp.int32)
    yy = pos // width
    xx = pos % width
    rows = []
    for ky in range(3):
        for kx in range(3):
            dy, dx = ky - 1, kx - 1
            valid = ((yy + dy >= 0) & (yy + dy < height) &
                     (xx + dx >= 0) & (xx + dx < width))
            rows.append(valid.astype(jnp.float32))
    return jnp.stack(rows, axis=0).reshape(9, 1, hw)


# ----------------------------- Pallas kernel --------------------------------

def _cotrain_cls_kernel(x_ref, wconv_ref, masks_ref, bconv_ref, wcls_ref, bcls_ref,
                        out_ref, *, height, width):
    """One grid step == TB images.

    x_ref     : (TB, C, HW)  bf16  per-image channel-major, spatial flattened on lanes
    wconv_ref : (9, F, C)    bf16  conv taps, tap index k = ky*3 + kx
    masks_ref : (9, 1, HW)   f32   SAME-padding validity masks (hoisted, resident)
    bconv_ref : (1, F, 1)    f32
    wcls_ref  : (F, LANE)    f32   classification head, zero-padded to 128 lanes
    bcls_ref  : (1, LANE)    f32
    out_ref   : (TB, LANE)   f32   lane-dense logits block
    """
    hw = height * width
    tb, cin, _ = x_ref.shape
    feat = wconv_ref.shape[1]

    x = x_ref[...]                                   # (TB, C, HW) bf16 — stays bf16 for the MXU

    def shifted(src_off):
        # result[..., p] = x[..., (p + src_off) mod HW]  (static shift; wrap positions are masked)
        s = src_off % hw
        if s == 0:
            return x
        return jnp.concatenate([x[..., s:], x[..., :s]], axis=-1)

    def tap(k, xk):
        w_b = jnp.broadcast_to(wconv_ref[k], (tb, feat, cin))        # (TB, F, C) bf16
        return jnp.einsum('bfc,bcp->bfp', w_b, xk,
                          preferred_element_type=jnp.float32)        # (TB, F, HW) f32 accum

    # 3x3 "same" conv as 9 shifted batched dot-accumulates. The centre tap needs no
    # shift / mask; the other 8 are masked on the f32 output (v5e has no bf16 VPU).
    h = tap(4, x)
    for ky in range(3):
        for kx in range(3):
            if ky == 1 and kx == 1:
                continue
            k = ky * 3 + kx
            xk = shifted((ky - 1) * width + (kx - 1))
            h = h + tap(k, xk) * masks_ref[k]                        # (1, HW) mask broadcast

    # Bias + ReLU on the lane-dense (TB, F, HW) activation.
    h = jnp.maximum(h + bconv_ref[...], 0.0)

    # Global average pool over the HW lanes -> (TB, F).
    pooled = jnp.sum(h, axis=-1) * (1.0 / float(hw))

    # Classification head: one (TB, F) x (F, LANE) matmul, lane-dense output.
    logits = jnp.dot(pooled, wcls_ref[...],
                     preferred_element_type=jnp.float32) + bcls_ref[...]
    out_ref[...] = logits


# ------------------------------ JAX wrapper ----------------------------------

def attacknet_forward(x_nchw, params, *, batch_tile=64):
    """Equivalent of AttackNet(cotrain_net, victim='classification').forward(x)."""
    b, c, h, w = x_nchw.shape
    hw = h * w
    feat = params["wconv"].shape[1]

    # Batch tile: amortize per-step pipeline overhead.  With multiple grid steps keep the
    # tile sublane-aligned (multiple of 8); default 64 keeps >=2 steps for batch >= 128
    # (v7x megacore) and a per-step VMEM footprint of ~1-2 MiB (fits v5e/v7x scoped VMEM).
    tb = min(int(batch_tile), b)
    if tb < b:
        tb = max(8, (tb // 8) * 8)
    b_pad = ((b + tb - 1) // tb) * tb

    # bf16 on the wire and into the MXU for the only per-sample HBM stream.
    x_flat = x_nchw.reshape(b, c, hw).astype(jnp.bfloat16)
    if b_pad != b:
        x_flat = jnp.pad(x_flat, ((0, b_pad - b), (0, 0), (0, 0)))

    wconv = params["wconv"].astype(jnp.bfloat16)                    # (9, F, C)  bf16 MXU operand
    bconv = params["bconv"].reshape(1, feat, 1).astype(jnp.float32)
    wcls = params["wcls_padded"].astype(jnp.float32)                # (F, LANE)
    bcls = params["bcls_padded"].astype(jnp.float32)                # (1, LANE)
    masks = _make_padding_masks(h, w)                               # (9, 1, HW) hoisted constants

    kernel = functools.partial(_cotrain_cls_kernel, height=h, width=w)
    grid = (b_pad // tb,)

    flops = 2 * b_pad * hw * feat * 9 * c + 2 * b_pad * feat * LANE
    bytes_accessed = (x_flat.size * 2 + wconv.size * 2 + masks.size * 4 +
                      bconv.size * 4 + wcls.size * 4 + bcls.size * 4 + b_pad * LANE * 4)

    out = pl.pallas_call(
        kernel,
        out_shape=jax.ShapeDtypeStruct((b_pad, LANE), jnp.float32),
        grid_spec=pltpu.PrefetchScalarGridSpec(
            num_scalar_prefetch=0,
            grid=grid,
            in_specs=[
                pl.BlockSpec((tb, c, hw), lambda i: (i, 0, 0)),     # per-step batch slab (pipelined)
                pl.BlockSpec((9, feat, c), lambda i: (0, 0, 0)),    # resident weights / constants
                pl.BlockSpec((9, 1, hw), lambda i: (0, 0, 0)),
                pl.BlockSpec((1, feat, 1), lambda i: (0, 0, 0)),
                pl.BlockSpec((feat, LANE), lambda i: (0, 0)),
                pl.BlockSpec((1, LANE), lambda i: (0, 0)),
            ],
            out_specs=pl.BlockSpec((tb, LANE), lambda i: (i, 0)),
        ),
        compiler_params=pltpu.CompilerParams(
            dimension_semantics=("parallel",),   # independent batch tiles: shardable across v7x's 2 TCs
        ),
        cost_estimate=pl.CostEstimate(flops=flops, transcendentals=0,
                                      bytes_accessed=bytes_accessed),
    )(x_flat, wconv, masks, bconv, wcls, bcls)

    return out[:b, :NUM_CLASSES]


# ----------------------------- params & reference ----------------------------

def init_params(key, c_in=4, feat=8, num_classes=NUM_CLASSES):
    """Deterministic synthetic parameters.

    Conv weight is stored as (9, F, C) with tap k = ky*3 + kx. A real PyTorch
    Conv2d weight W of shape (F, C, 3, 3) maps to this layout via
    W.permute(2, 3, 0, 1).reshape(9, F, C).
    """
    k1, k2, k3, k4, k5, k6 = jax.random.split(key, 6)
    wconv = jax.random.normal(k1, (9, feat, c_in), jnp.float32) * 0.1
    bconv = jax.random.normal(k2, (feat, 1), jnp.float32) * 0.1
    wcls = jax.random.normal(k3, (feat, num_classes), jnp.float32) * 0.1
    bcls = jax.random.normal(k4, (1, num_classes), jnp.float32) * 0.1
    wcls_p = jnp.zeros((feat, LANE), jnp.float32).at[:, :num_classes].set(wcls)
    bcls_p = jnp.zeros((1, LANE), jnp.float32).at[:, :num_classes].set(bcls)
    # Unused 'regression' head — present in the co-train net, statically not selected.
    wreg = jax.random.normal(k5, (feat, 1), jnp.float32) * 0.1
    breg = jax.random.normal(k6, (1, 1), jnp.float32) * 0.1
    return {"wconv": wconv, "bconv": bconv,
            "wcls": wcls, "bcls": bcls,
            "wcls_padded": wcls_p, "bcls_padded": bcls_p,
            "wreg": wreg, "breg": breg}


def attacknet_reference(x_nchw, params):
    """Pure-JAX reference (same bf16 rounding of input & conv weights as the kernel path)."""
    b, c, h, w = x_nchw.shape
    feat = params["wconv"].shape[1]
    x = x_nchw.astype(jnp.bfloat16).astype(jnp.float32)
    wconv = params["wconv"].astype(jnp.bfloat16).astype(jnp.float32)
    w_oihw = wconv.reshape(3, 3, feat, c).transpose(2, 3, 0, 1)     # (F, C, 3, 3)
    y = lax.conv_general_dilated(
        x, w_oihw, window_strides=(1, 1), padding=[(1, 1), (1, 1)],
        dimension_numbers=("NCHW", "OIHW", "NCHW"),
        precision=lax.Precision.HIGHEST)
    y = jnp.maximum(y + params["bconv"].reshape(1, feat, 1, 1), 0.0)
    pooled = y.mean(axis=(2, 3))                                    # (B, F)
    return jnp.dot(pooled, params["wcls"],
                   precision=lax.Precision.HIGHEST) + params["bcls"]


if __name__ == "__main__":
    key = jax.random.PRNGKey(0)
    kx, kp = jax.random.split(key)

    B, C, H, W = 2, 4, 16, 16
    x = jax.random.normal(kx, (B, C, H, W), jnp.float32)    # NCHW, like PyTorch
    params = init_params(kp, c_in=C, feat=8, num_classes=NUM_CLASSES)

    out = attacknet_forward(x, params)
    jax.block_until_ready(out)
    assert out.shape == (B, NUM_CLASSES) and out.dtype == jnp.float32

    ref = attacknet_reference(x, params)
    max_err = float(jnp.max(jnp.abs(out - ref)))
    assert jnp.allclose(out, ref, rtol=5e-3, atol=2e-3), f"max abs err {max_err}"
    print("KERNEL_OK")
</pallas_src>

<mosaic_0001>
module attributes {stable_mosaic.version = 11 : i64} {
  func.func @_cotrain_cls_kernel(%arg0: i32, %arg1: memref<2x4x256xbf16, #tpu.memory_space<vmem>>, %arg2: memref<9x8x4xbf16, #tpu.memory_space<vmem>>, %arg3: memref<9x1x256xf32, #tpu.memory_space<vmem>>, %arg4: memref<1x8x1xf32, #tpu.memory_space<vmem>>, %arg5: memref<8x128xf32, #tpu.memory_space<vmem>>, %arg6: memref<1x128xf32, #tpu.memory_space<vmem>>, %arg7: memref<2x128xf32, #tpu.memory_space<vmem>>) attributes {dimension_semantics = [#tpu.dimension_semantics<parallel>], iteration_bounds = array<i64: 1>, scalar_prefetch = 0 : i64, scratch_operands = 0 : i64, tpu.core_type = #tpu.core_type<tc>, window_params = [{transform_indices = @transform_0, window_bounds = array<i64: 2, 4, 256>}, {pipeline_mode = #tpu.pipeline_mode<synchronous>, transform_indices = @transform_1, window_bounds = array<i64: 9, 8, 4>}, {pipeline_mode = #tpu.pipeline_mode<synchronous>, transform_indices = @transform_2, window_bounds = array<i64: 9, 1, 256>}, {pipeline_mode = #tpu.pipeline_mode<synchronous>, transform_indices = @transform_3, window_bounds = array<i64: 1, 8, 1>}, {pipeline_mode = #tpu.pipeline_mode<synchronous>, transform_indices = @transform_4, window_bounds = array<i64: 8, 128>}, {pipeline_mode = #tpu.pipeline_mode<synchronous>, transform_indices = @transform_5, window_bounds = array<i64: 1, 128>}, {transform_indices = @transform_6, window_bounds = array<i64: 2, 128>}]} {
    %c0 = arith.constant 0 : index
    %c0_0 = arith.constant 0 : index
    %c0_1 = arith.constant 0 : index
    %0 = vector.load %arg1[%c0, %c0_0, %c0_1] : memref<2x4x256xbf16, #tpu.memory_space<vmem>>, vector<2x4x256xbf16>
    %c4 = arith.constant 4 : index
    %c0_2 = arith.constant 0 : index
    %c0_3 = arith.constant 0 : index
    %1 = vector.load %arg2[%c4, %c0_2, %c0_3] : memref<9x8x4xbf16, #tpu.memory_space<vmem>>, vector<1x8x4xbf16>
    %2 = vector.shape_cast %1 : vector<1x8x4xbf16> to vector<8x4xbf16>
    %3 = vector.shape_cast %2 : vector<8x4xbf16> to vector<1x8x4xbf16>
    %4 = vector.broadcast %3 : vector<1x8x4xbf16> to vector<2x8x4xbf16>
    "tpu.trace_start"() <{level = 10 : i32, message = "bfc,bcp->bfp"}> : () -> ()
    %cst = arith.constant dense<0.000000e+00> : vector<2x8x256xf32>
    %5 = tpu.matmul %4, %0, %cst {dimension_numbers = #tpu.dot_dimension_numbers<[2], [1], [1], [2], [0, 0, 0, 1, 1, 2], [0], [0]>} : vector<2x8x4xbf16>, vector<2x4x256xbf16>, vector<2x8x256xf32> -> vector<2x8x256xf32>
    "tpu.trace_stop"() : () -> ()
    %6 = vector.extract_strided_slice %0 {offsets = [0, 0, 239], sizes = [2, 4, 17], strides = [1, 1, 1]} : vector<2x4x256xbf16> to vector<2x4x17xbf16>
    %7 = vector.extract_strided_slice %0 {offsets = [0, 0, 0], sizes = [2, 4, 239], strides = [1, 1, 1]} : vector<2x4x256xbf16> to vector<2x4x239xbf16>
    %8 = tpu.concatenate %6, %7 in 2 : vector<2x4x17xbf16>, vector<2x4x239xbf16> -> vector<2x4x256xbf16>
    %c0_4 = arith.constant 0 : index
    %c0_5 = arith.constant 0 : index
    %c0_6 = arith.constant 0 : index
    %9 = vector.load %arg2[%c0_4, %c0_5, %c0_6] : memref<9x8x4xbf16, #tpu.memory_space<vmem>>, vector<1x8x4xbf16>
    %10 = vector.shape_cast %9 : vector<1x8x4xbf16> to vector<8x4xbf16>
    %11 = vector.shape_cast %10 : vector<8x4xbf16> to vector<1x8x4xbf16>
    %12 = vector.broadcast %11 : vector<1x8x4xbf16> to vector<2x8x4xbf16>
    "tpu.trace_start"() <{level = 10 : i32, message = "bfc,bcp->bfp"}> : () -> ()
    %cst_7 = arith.constant dense<0.000000e+00> : vector<2x8x256xf32>
    %13 = tpu.matmul %12, %8, %cst_7 {dimension_numbers = #tpu.dot_dimension_numbers<[2], [1], [1], [2], [0, 0, 0, 1, 1, 2], [0], [0]>} : vector<2x8x4xbf16>, vector<2x4x256xbf16>, vector<2x8x256xf32> -> vector<2x8x256xf32>
    "tpu.trace_stop"() : () -> ()
    %c0_8 = arith.constant 0 : index
    %c0_9 = arith.constant 0 : index
    %c0_10 = arith.constant 0 : index
    %14 = vector.load %arg3[%c0_8, %c0_9, %c0_10] : memref<9x1x256xf32, #tpu.memory_space<vmem>>, vector<1x1x256xf32>
    %15 = vector.shape_cast %14 : vector<1x1x256xf32> to vector<1x256xf32>
    %16 = vector.shape_cast %15 : vector<1x256xf32> to vector<1x1x256xf32>
    %17 = vector.broadcast %16 : vector<1x1x256xf32> to vector<2x8x256xf32>
    %18 = arith.mulf %13, %17 : vector<2x8x256xf32>
    %19 = arith.addf %5, %18 : vector<2x8x256xf32>
    %20 = vector.extract_strided_slice %0 {offsets = [0, 0, 240], sizes = [2, 4, 16], strides = [1, 1, 1]} : vector<2x4x256xbf16> to vector<2x4x16xbf16>
    %21 = vector.extract_strided_slice %0 {offsets = [0, 0, 0], sizes = [2, 4, 240], strides = [1, 1, 1]} : vector<2x4x256xbf16> to vector<2x4x240xbf16>
    %22 = tpu.concatenate %20, %21 in 2 : vector<2x4x16xbf16>, vector<2x4x240xbf16> -> vector<2x4x256xbf16>
    %c1 = arith.constant 1 : index
    %c0_11 = arith.constant 0 : index
    %c0_12 = arith.constant 0 : index
    %23 = vector.load %arg2[%c1, %c0_11, %c0_12] : memref<9x8x4xbf16, #tpu.memory_space<vmem>>, vector<1x8x4xbf16>
    %24 = vector.shape_cast %23 : vector<1x8x4xbf16> to vector<8x4xbf16>
    %25 = vector.shape_cast %24 : vector<8x4xbf16> to vector<1x8x4xbf16>
    %26 = vector.broadcast %25 : vector<1x8x4xbf16> to vector<2x8x4xbf16>
    "tpu.trace_start"() <{level = 10 : i32, message = "bfc,bcp->bfp"}> : () -> ()
    %cst_13 = arith.constant dense<0.000000e+00> : vector<2x8x256xf32>
    %27 = tpu.matmul %26, %22, %cst_13 {dimension_numbers = #tpu.dot_dimension_numbers<[2], [1], [1], [2], [0, 0, 0, 1, 1, 2], [0], [0]>} : vector<2x8x4xbf16>, vector<2x4x256xbf16>, vector<2x8x256xf32> -> vector<2x8x256xf32>
    "tpu.trace_stop"() : () -> ()
    %c1_14 = arith.constant 1 : index
    %c0_15 = arith.constant 0 : index
    %c0_16 = arith.constant 0 : index
    %28 = vector.load %arg3[%c1_14, %c0_15, %c0_16] : memref<9x1x256xf32, #tpu.memory_space<vmem>>, vector<1x1x256xf32>
    %29 = vector.shape_cast %28 : vector<1x1x256xf32> to vector<1x256xf32>
    %30 = vector.shape_cast %29 : vector<1x256xf32> to vector<1x1x256xf32>
    %31 = vector.broadcast %30 : vector<1x1x256xf32> to vector<2x8x256xf32>
    %32 = arith.mulf %27, %31 : vector<2x8x256xf32>
    %33 = arith.addf %19, %32 : vector<2x8x256xf32>
    %34 = vector.extract_strided_slice %0 {offsets = [0, 0, 241], sizes = [2, 4, 15], strides = [1, 1, 1]} : vector<2x4x256xbf16> to vector<2x4x15xbf16>
    %35 = vector.extract_strided_slice %0 {offsets = [0, 0, 0], sizes = [2, 4, 241], strides = [1, 1, 1]} : vector<2x4x256xbf16> to vector<2x4x241xbf16>
    %36 = tpu.concatenate %34, %35 in 2 : vector<2x4x15xbf16>, vector<2x4x241xbf16> -> vector<2x4x256xbf16>
    %c2 = arith.constant 2 : index
    %c0_17 = arith.constant 0 : index
    %c0_18 = arith.constant 0 : index
    %37 = vector.load %arg2[%c2, %c0_17, %c0_18] : memref<9x8x4xbf16, #tpu.memory_space<vmem>>, vector<1x8x4xbf16>
    %38 = vector.shape_cast %37 : vector<1x8x4xbf16> to vector<8x4xbf16>
    %39 = vector.shape_cast %38 : vector<8x4xbf16> to vector<1x8x4xbf16>
    %40 = vector.broadcast %39 : vector<1x8x4xbf16> to vector<2x8x4xbf16>
    "tpu.trace_start"() <{level = 10 : i32, message = "bfc,bcp->bfp"}> : () -> ()
    %cst_19 = arith.constant dense<0.000000e+00> : vector<2x8x256xf32>
    %41 = tpu.matmul %40, %36, %cst_19 {dimension_numbers = #tpu.dot_dimension_numbers<[2], [1], [1], [2], [0, 0, 0, 1, 1, 2], [0], [0]>} : vector<2x8x4xbf16>, vector<2x4x256xbf16>, vector<2x8x256xf32> -> vector<2x8x256xf32>
    "tpu.trace_stop"() : () -> ()
    %c2_20 = arith.constant 2 : index
    %c0_21 = arith.constant 0 : index
    %c0_22 = arith.constant 0 : index
    %42 = vector.load %arg3[%c2_20, %c0_21, %c0_22] : memref<9x1x256xf32, #tpu.memory_space<vmem>>, vector<1x1x256xf32>
    %43 = vector.shape_cast %42 : vector<1x1x256xf32> to vector<1x256xf32>
    %44 = vector.shape_cast %43 : vector<1x256xf32> to vector<1x1x256xf32>
    %45 = vector.broadcast %44 : vector<1x1x256xf32> to vector<2x8x256xf32>
    %46 = arith.mulf %41, %45 : vector<2x8x256xf32>
    %47 = arith.addf %33, %46 : vector<2x8x256xf32>
    %48 = vector.extract_strided_slice %0 {offsets = [0, 0, 255], sizes = [2, 4, 1], strides = [1, 1, 1]} : vector<2x4x256xbf16> to vector<2x4x1xbf16>
    %49 = vector.extract_strided_slice %0 {offsets = [0, 0, 0], sizes = [2, 4, 255], strides = [1, 1, 1]} : vector<2x4x256xbf16> to vector<2x4x255xbf16>
    %50 = tpu.concatenate %48, %49 in 2 : vector<2x4x1xbf16>, vector<2x4x255xbf16> -> vector<2x4x256xbf16>
    %c3 = arith.constant 3 : index
    %c0_23 = arith.constant 0 : index
    %c0_24 = arith.constant 0 : index
    %51 = vector.load %arg2[%c3, %c0_23, %c0_24] : memref<9x8x4xbf16, #tpu.memory_space<vmem>>, vector<1x8x4xbf16>
    %52 = vector.shape_cast %51 : vector<1x8x4xbf16> to vector<8x4xbf16>
    %53 = vector.shape_cast %52 : vector<8x4xbf16> to vector<1x8x4xbf16>
    %54 = vector.broadcast %53 : vector<1x8x4xbf16> to vector<2x8x4xbf16>
    "tpu.trace_start"() <{level = 10 : i32, message = "bfc,bcp->bfp"}> : () -> ()
    %cst_25 = arith.constant dense<0.000000e+00> : vector<2x8x256xf32>
    %55 = tpu.matmul %54, %50, %cst_25 {dimension_numbers = #tpu.dot_dimension_numbers<[2], [1], [1], [2], [0, 0, 0, 1, 1, 2], [0], [0]>} : vector<2x8x4xbf16>, vector<2x4x256xbf16>, vector<2x8x256xf32> -> vector<2x8x256xf32>
    "tpu.trace_stop"() : () -> ()
    %c3_26 = arith.constant 3 : index
    %c0_27 = arith.constant 0 : index
    %c0_28 = arith.constant 0 : index
    %56 = vector.load %arg3[%c3_26, %c0_27, %c0_28] : memref<9x1x256xf32, #tpu.memory_space<vmem>>, vector<1x1x256xf32>
    %57 = vector.shape_cast %56 : vector<1x1x256xf32> to vector<1x256xf32>
    %58 = vector.shape_cast %57 : vector<1x256xf32> to vector<1x1x256xf32>
    %59 = vector.broadcast %58 : vector<1x1x256xf32> to vector<2x8x256xf32>
    %60 = arith.mulf %55, %59 : vector<2x8x256xf32>
    %61 = arith.addf %47, %60 : vector<2x8x256xf32>
    %62 = vector.extract_strided_slice %0 {offsets = [0, 0, 1], sizes = [2, 4, 255], strides = [1, 1, 1]} : vector<2x4x256xbf16> to vector<2x4x255xbf16>
    %63 = vector.extract_strided_slice %0 {offsets = [0, 0, 0], sizes = [2, 4, 1], strides = [1, 1, 1]} : vector<2x4x256xbf16> to vector<2x4x1xbf16>
    %64 = tpu.concatenate %62, %63 in 2 : vector<2x4x255xbf16>, vector<2x4x1xbf16> -> vector<2x4x256xbf16>
    %c5 = arith.constant 5 : index
    %c0_29 = arith.constant 0 : index
    %c0_30 = arith.constant 0 : index
    %65 = vector.load %arg2[%c5, %c0_29, %c0_30] : memref<9x8x4xbf16, #tpu.memory_space<vmem>>, vector<1x8x4xbf16>
    %66 = vector.shape_cast %65 : vector<1x8x4xbf16> to vector<8x4xbf16>
    %67 = vector.shape_cast %66 : vector<8x4xbf16> to vector<1x8x4xbf16>
    %68 = vector.broadcast %67 : vector<1x8x4xbf16> to vector<2x8x4xbf16>
    "tpu.trace_start"() <{level = 10 : i32, message = "bfc,bcp->bfp"}> : () -> ()
    %cst_31 = arith.constant dense<0.000000e+00> : vector<2x8x256xf32>
    %69 = tpu.matmul %68, %64, %cst_31 {dimension_numbers = #tpu.dot_dimension_numbers<[2], [1], [1], [2], [0, 0, 0, 1, 1, 2], [0], [0]>} : vector<2x8x4xbf16>, vector<2x4x256xbf16>, vector<2x8x256xf32> -> vector<2x8x256xf32>
    "tpu.trace_stop"() : () -> ()
    %c5_32 = arith.constant 5 : index
    %c0_33 = arith.constant 0 : index
    %c0_34 = arith.constant 0 : index
    %70 = vector.load %arg3[%c5_32, %c0_33, %c0_34] : memref<9x1x256xf32, #tpu.memory_space<vmem>>, vector<1x1x256xf32>
    %71 = vector.shape_cast %70 : vector<1x1x256xf32> to vector<1x256xf32>
    %72 = vector.shape_cast %71 : vector<1x256xf32> to vector<1x1x256xf32>
    %73 = vector.broadcast %72 : vector<1x1x256xf32> to vector<2x8x256xf32>
    %74 = arith.mulf %69, %73 : vector<2x8x256xf32>
    %75 = arith.addf %61, %74 : vector<2x8x256xf32>
    %76 = vector.extract_strided_slice %0 {offsets = [0, 0, 15], sizes = [2, 4, 241], strides = [1, 1, 1]} : vector<2x4x256xbf16> to vector<2x4x241xbf16>
    %77 = vector.extract_strided_slice %0 {offsets = [0, 0, 0], sizes = [2, 4, 15], strides = [1, 1, 1]} : vector<2x4x256xbf16> to vector<2x4x15xbf16>
    %78 = tpu.concatenate %76, %77 in 2 : vector<2x4x241xbf16>, vector<2x4x15xbf16> -> vector<2x4x256xbf16>
    %c6 = arith.constant 6 : index
    %c0_35 = arith.constant 0 : index
    %c0_36 = arith.constant 0 : index
    %79 = vector.load %arg2[%c6, %c0_35, %c0_36] : memref<9x8x4xbf16, #tpu.memory_space<vmem>>, vector<1x8x4xbf16>
    %80 = vector.shape_cast %79 : vector<1x8x4xbf16> to vector<8x4xbf16>
    %81 = vector.shape_cast %80 : vector<8x4xbf16> to vector<1x8x4xbf16>
    %82 = vector.broadcast %81 : vector<1x8x4xbf16> to vector<2x8x4xbf16>
    "tpu.trace_start"() <{level = 10 : i32, message = "bfc,bcp->bfp"}> : () -> ()
    %cst_37 = arith.constant dense<0.000000e+00> : vector<2x8x256xf32>
    %83 = tpu.matmul %82, %78, %cst_37 {dimension_numbers = #tpu.dot_dimension_numbers<[2], [1], [1], [2], [0, 0, 0, 1, 1, 2], [0], [0]>} : vector<2x8x4xbf16>, vector<2x4x256xbf16>, vector<2x8x256xf32> -> vector<2x8x256xf32>
    "tpu.trace_stop"() : () -> ()
    %c6_38 = arith.constant 6 : index
    %c0_39 = arith.constant 0 : index
    %c0_40 = arith.constant 0 : index
    %84 = vector.load %arg3[%c6_38, %c0_39, %c0_40] : memref<9x1x256xf32, #tpu.memory_space<vmem>>, vector<1x1x256xf32>
    %85 = vector.shape_cast %84 : vector<1x1x256xf32> to vector<1x256xf32>
    %86 = vector.shape_cast %85 : vector<1x256xf32> to vector<1x1x256xf32>
    %87 = vector.broadcast %86 : vector<1x1x256xf32> to vector<2x8x256xf32>
    %88 = arith.mulf %83, %87 : vector<2x8x256xf32>
    %89 = arith.addf %75, %88 : vector<2x8x256xf32>
    %90 = vector.extract_strided_slice %0 {offsets = [0, 0, 16], sizes = [2, 4, 240], strides = [1, 1, 1]} : vector<2x4x256xbf16> to vector<2x4x240xbf16>
    %91 = vector.extract_strided_slice %0 {offsets = [0, 0, 0], sizes = [2, 4, 16], strides = [1, 1, 1]} : vector<2x4x256xbf16> to vector<2x4x16xbf16>
    %92 = tpu.concatenate %90, %91 in 2 : vector<2x4x240xbf16>, vector<2x4x16xbf16> -> vector<2x4x256xbf16>
    %c7 = arith.constant 7 : index
    %c0_41 = arith.constant 0 : index
    %c0_42 = arith.constant 0 : index
    %93 = vector.load %arg2[%c7, %c0_41, %c0_42] : memref<9x8x4xbf16, #tpu.memory_space<vmem>>, vector<1x8x4xbf16>
    %94 = vector.shape_cast %93 : vector<1x8x4xbf16> to vector<8x4xbf16>
    %95 = vector.shape_cast %94 : vector<8x4xbf16> to vector<1x8x4xbf16>
    %96 = vector.broadcast %95 : vector<1x8x4xbf16> to vector<2x8x4xbf16>
    "tpu.trace_start"() <{level = 10 : i32, message = "bfc,bcp->bfp"}> : () -> ()
    %cst_43 = arith.constant dense<0.000000e+00> : vector<2x8x256xf32>
    %97 = tpu.matmul %96, %92, %cst_43 {dimension_numbers = #tpu.dot_dimension_numbers<[2], [1], [1], [2], [0, 0, 0, 1, 1, 2], [0], [0]>} : vector<2x8x4xbf16>, vector<2x4x256xbf16>, vector<2x8x256xf32> -> vector<2x8x256xf32>
    "tpu.trace_stop"() : () -> ()
    %c7_44 = arith.constant 7 : index
    %c0_45 = arith.constant 0 : index
    %c0_46 = arith.constant 0 : index
    %98 = vector.load %arg3[%c7_44, %c0_45, %c0_46] : memref<9x1x256xf32, #tpu.memory_space<vmem>>, vector<1x1x256xf32>
    %99 = vector.shape_cast %98 : vector<1x1x256xf32> to vector<1x256xf32>
    %100 = vector.shape_cast %99 : vector<1x256xf32> to vector<1x1x256xf32>
    %101 = vector.broadcast %100 : vector<1x1x256xf32> to vector<2x8x256xf32>
    %102 = arith.mulf %97, %101 : vector<2x8x256xf32>
    %103 = arith.addf %89, %102 : vector<2x8x256xf32>
    %104 = vector.extract_strided_slice %0 {offsets = [0, 0, 17], sizes = [2, 4, 239], strides = [1, 1, 1]} : vector<2x4x256xbf16> to vector<2x4x239xbf16>
    %105 = vector.extract_strided_slice %0 {offsets = [0, 0, 0], sizes = [2, 4, 17], strides = [1, 1, 1]} : vector<2x4x256xbf16> to vector<2x4x17xbf16>
    %106 = tpu.concatenate %104, %105 in 2 : vector<2x4x239xbf16>, vector<2x4x17xbf16> -> vector<2x4x256xbf16>
    %c8 = arith.constant 8 : index
    %c0_47 = arith.constant 0 : index
    %c0_48 = arith.constant 0 : index
    %107 = vector.load %arg2[%c8, %c0_47, %c0_48] : memref<9x8x4xbf16, #tpu.memory_space<vmem>>, vector<1x8x4xbf16>
    %108 = vector.shape_cast %107 : vector<1x8x4xbf16> to vector<8x4xbf16>
    %109 = vector.shape_cast %108 : vector<8x4xbf16> to vector<1x8x4xbf16>
    %110 = vector.broadcast %109 : vector<1x8x4xbf16> to vector<2x8x4xbf16>
    "tpu.trace_start"() <{level = 10 : i32, message = "bfc,bcp->bfp"}> : () -> ()
    %cst_49 = arith.constant dense<0.000000e+00> : vector<2x8x256xf32>
    %111 = tpu.matmul %110, %106, %cst_49 {dimension_numbers = #tpu.dot_dimension_numbers<[2], [1], [1], [2], [0, 0, 0, 1, 1, 2], [0], [0]>} : vector<2x8x4xbf16>, vector<2x4x256xbf16>, vector<2x8x256xf32> -> vector<2x8x256xf32>
    "tpu.trace_stop"() : () -> ()
    %c8_50 = arith.constant 8 : index
    %c0_51 = arith.constant 0 : index
    %c0_52 = arith.constant 0 : index
    %112 = vector.load %arg3[%c8_50, %c0_51, %c0_52] : memref<9x1x256xf32, #tpu.memory_space<vmem>>, vector<1x1x256xf32>
    %113 = vector.shape_cast %112 : vector<1x1x256xf32> to vector<1x256xf32>
    %114 = vector.shape_cast %113 : vector<1x256xf32> to vector<1x1x256xf32>
    %115 = vector.broadcast %114 : vector<1x1x256xf32> to vector<2x8x256xf32>
    %116 = arith.mulf %111, %115 : vector<2x8x256xf32>
    %117 = arith.addf %103, %116 : vector<2x8x256xf32>
    %c0_53 = arith.constant 0 : index
    %c0_54 = arith.constant 0 : index
    %c0_55 = arith.constant 0 : index
    %118 = vector.load %arg4[%c0_53, %c0_54, %c0_55] : memref<1x8x1xf32, #tpu.memory_space<vmem>>, vector<1x8x1xf32>
    %119 = vector.broadcast %118 : vector<1x8x1xf32> to vector<2x8x256xf32>
    %120 = arith.addf %117, %119 : vector<2x8x256xf32>
    %cst_56 = arith.constant 0.000000e+00 : f32
    %121 = vector.broadcast %cst_56 : f32 to vector<2x8x256xf32>
    %122 = arith.maximumf %120, %121 : vector<2x8x256xf32>
    %cst_57 = arith.constant dense<0.000000e+00> : vector<2x8xf32>
    %123 = vector.multi_reduction <add>, %122, %cst_57 [2] : vector<2x8x256xf32> to vector<2x8xf32>
    %cst_58 = arith.constant 3.906250e-03 : f32
    %124 = vector.broadcast %cst_58 : f32 to vector<2x8xf32>
    %125 = arith.mulf %123, %124 : vector<2x8xf32>
    %c0_59 = arith.constant 0 : index
    %c0_60 = arith.constant 0 : index
    %126 = vector.load %arg5[%c0_59, %c0_60] : memref<8x128xf32, #tpu.memory_space<vmem>>, vector<8x128xf32>
    %cst_61 = arith.constant dense<0.000000e+00> : vector<2x128xf32>
    %127 = tpu.matmul %125, %126, %cst_61 {dimension_numbers = #tpu.dot_dimension_numbers<[1], [0], [0], [1], [0, 0, 1, 1], [], []>} : vector<2x8xf32>, vector<8x128xf32>, vector<2x128xf32> -> vector<2x128xf32>
    %c0_62 = arith.constant 0 : index
    %c0_63 = arith.constant 0 : index
    %128 = vector.load %arg6[%c0_62, %c0_63] : memref<1x128xf32, #tpu.memory_space<vmem>>, vector<1x128xf32>
    %129 = vector.broadcast %128 : vector<1x128xf32> to vector<2x128xf32>
    %130 = arith.addf %127, %129 : vector<2x128xf32>
    %c0_64 = arith.constant 0 : index
    %c0_65 = arith.constant 0 : index
    %131 = vector.load %arg7[%c0_64, %c0_65] : memref<2x128xf32, #tpu.memory_space<vmem>>, vector<2x128xf32>
    tpu.vector_store %arg7[%c0_64, %c0_65], %130 {strides = array<i32>} : memref<2x128xf32, #tpu.memory_space<vmem>>, vector<2x128xf32>,
    return
  }
  func.func @transform_0(%arg0: i32) -> (i32, i32, i32) {
    %c0_i32 = arith.constant 0 : i32
    %c0_i32_0 = arith.constant 0 : i32
    %c0_i32_1 = arith.constant 0 : i32
    return %arg0, %c0_i32, %c0_i32_0 : i32, i32, i32
  }
  func.func @transform_1(%arg0: i32) -> (i32, i32, i32) {
    %c0_i32 = arith.constant 0 : i32
    %c0_i32_0 = arith.constant 0 : i32
    %c0_i32_1 = arith.constant 0 : i32
    %c0_i32_2 = arith.constant 0 : i32
    return %c0_i32, %c0_i32_0, %c0_i32_1 : i32, i32, i32
  }
  func.func @transform_2(%arg0: i32) -> (i32, i32, i32) {
    %c0_i32 = arith.constant 0 : i32
    %c0_i32_0 = arith.constant 0 : i32
    %c0_i32_1 = arith.constant 0 : i32
    %c0_i32_2 = arith.constant 0 : i32
    return %c0_i32, %c0_i32_0, %c0_i32_1 : i32, i32, i32
  }
  func.func @transform_3(%arg0: i32) -> (i32, i32, i32) {
    %c0_i32 = arith.constant 0 : i32
    %c0_i32_0 = arith.constant 0 : i32
    %c0_i32_1 = arith.constant 0 : i32
    %c0_i32_2 = arith.constant 0 : i32
    return %c0_i32, %c0_i32_0, %c0_i32_1 : i32, i32, i32
  }
  func.func @transform_4(%arg0: i32) -> (i32, i32) {
    %c0_i32 = arith.constant 0 : i32
    %c0_i32_0 = arith.constant 0 : i32
    %c0_i32_1 = arith.constant 0 : i32
    return %c0_i32, %c0_i32_0 : i32, i32
  }
  func.func @transform_5(%arg0: i32) -> (i32, i32) {
    %c0_i32 = arith.constant 0 : i32
    %c0_i32_0 = arith.constant 0 : i32
    %c0_i32_1 = arith.constant 0 : i32
    return %c0_i32, %c0_i32_0 : i32, i32
  }
  func.func @transform_6(%arg0: i32) -> (i32, i32) {
    %c0_i32 = arith.constant 0 : i32
    %c0_i32_0 = arith.constant 0 : i32
    return %arg0, %c0_i32 : i32, i32
  }
}

</mosaic_0001>

<llo_original>
// kernel: tpu_custom_call.1
$region0: #{tpu_custom_call.1}
  #allocation0 [shape = 'u32[]', space=smem, size = 0x4, offset = 0x4, fixed_abs, tag = 'smem constant byte address 0x4 - core index']
  #allocation1 [shape = 'u32[144,128]{1,0:T(1,128)}', space=vmem, size = 0x12000, scoped, tag = 'internal scratch']
  %s0 = inlined_call_operand.vmem [shape: bf16[2,4,256], index: 0, kind: input, shape index: {}]
  %s1 = inlined_call_operand.vmem [shape: bf16[9,8,4], index: 1, kind: input, shape index: {}]
  %s2 = inlined_call_operand.vmem [shape: f32[9,1,256], index: 2, kind: input, shape index: {}]
  %s3 = inlined_call_operand.vmem [shape: f32[1,8,1], index: 3, kind: input, shape index: {}]
  %s4 = inlined_call_operand.vmem [shape: f32[8,128], index: 4, kind: input, shape index: {}]
  %s5 = inlined_call_operand.vmem [shape: f32[1,128], index: 5, kind: input, shape index: {}]
  %s6 = inlined_call_operand.hbm [shape: f32[2,128], index: 6, kind: output, shape index: {}]
  %s7 = sld [smem:[#allocation0]]
  $region34: #{tpu_custom_call.1} parent=0
    _
  %s9 = ssub.s32 1, %s7
  %s10 = scalar_select 0, %s9, %s7
  $region1: #{tpu_custom_call.1} parent=0
    #allocation2 [shape = 'u8[1024]{0}', space=vmem, size = 0x400, scoped, tag = 'output window, operand 0, single buffered']
    #allocation3 [shape = 's32[1]{0}', space=sflag, size = 0x4, scoped, tag = 'scoped memory for tpu_custom_call.1']
    %11 = vsyncpa [#allocation3], 0
    // Predicated region
    $region2: #{tpu_custom_call.1} parent=1 // pred_check
      _
    $region3: #{tpu_custom_call.1} parent=1 // pred_check_branch
      %13 = sbr.rel (0) target = $region5
    $region4: #{tpu_custom_call.1} parent=1 // pred_region
      _
    $region5: #{tpu_custom_call.1} parent=1 // pred_fallthru
      _
    // Predicated region
    $region6: #{tpu_custom_call.1} parent=1 // pred_check
      _
    $region7: #{tpu_custom_call.1} parent=1 // pred_check_branch
      %15 = sbr.rel (0) target = $region9
    $region8: #{tpu_custom_call.1} parent=1 // pred_region
      _
    $region9: #{tpu_custom_call.1} parent=1 // pred_fallthru
      _
    // Predicated region
    $region10: #{tpu_custom_call.1} parent=1 // pred_check
      _
    $region11: #{tpu_custom_call.1} parent=1 // pred_check_branch
      %17 = sbr.rel (0) target = $region13
    $region12: #{tpu_custom_call.1} parent=1 // pred_region
      _
    $region13: #{tpu_custom_call.1} parent=1 // pred_fallthru
      _
    // Predicated region
    $region14: #{tpu_custom_call.1} parent=1 // pred_check
      _
    $region15: #{tpu_custom_call.1} parent=1 // pred_check_branch
      %19 = sbr.rel (0) target = $region17
    $region16: #{tpu_custom_call.1} parent=1 // pred_region
      _
    $region17: #{tpu_custom_call.1} parent=1 // pred_fallthru
      _
    // Predicated region
    $region18: #{tpu_custom_call.1} parent=1 // pred_check
      _
    $region19: #{tpu_custom_call.1} parent=1 // pred_check_branch
      %21 = sbr.rel (0) target = $region21
    $region20: #{tpu_custom_call.1} parent=1 // pred_region
      _
    $region21: #{tpu_custom_call.1} parent=1 // pred_fallthru
      _
    // Predicated region
    $region22: #{tpu_custom_call.1} parent=1 // pred_check
      _
    $region23: #{tpu_custom_call.1} parent=1 // pred_check_branch
      %23 = sbr.rel (0) target = $region25
    $region24: #{tpu_custom_call.1} parent=1 // pred_region
      _
    $region25: #{tpu_custom_call.1} parent=1 // pred_fallthru
      _
    %v25 = vld [vmem:[%s0] sm:$0xf]
    %v26 = vld [vmem:[%s0 + $0x4] sm:$0xf]
    %s27 = scalar_lea.vmem %s1, 16
    %v28 = vld [vmem:[%s27] sm:$0xf]
    %v32 = vunpack.c.l.s4 1983009808
    %v33 = vunpack.c.0.s8 %v32
    %v34 = vlaneseq
    %v35 = vshrl.u32 %v34, 7
    %v36 = vsub.s32 %v33, %v35
    %v37 = vrot.slane %v25, %v36
    %v38 = vcombine.high %v37, %v37
    %v40 = vunpack.c.l.s4 1983009808
    %v41 = vunpack.c.0.s8 %v40
    %v42 = vlaneseq
    %v43 = vshrl.u32 %v42, 7
    %v44 = vsub.s32 %v41, %v43
    %v45 = vrot.slane %v26, %v44
    %v46 = vcombine.high %v45, %v45
    %47 = vrot.lane.b32.xlu0 %v38, 17
    %v48 = vpop.permute.xlu0 %47
    %49 = vrot.lane.b32.xlu0 %v46, 17
    %v50 = vpop.permute.xlu0 %49
    %51 = vrot.lane.b32.xlu0 %v37, 17
    %v52 = vpop.permute.xlu0 %51
    %53 = vrot.lane.b32.xlu0 %v45, 17
    %v54 = vpop.permute.xlu0 %53
    %vm55 = vcmask 138240
    %v56 = vsel %vm55, %v52, %v48
    %v57 = vsel %vm55, %v54, %v50
    %vm58 = vcmask 138240
    %v61 = vsel %vm58, %v48, %v52
    %v64 = vsel %vm58, %v50, %v54
    %v65 = vld [vmem:[%s1] sm:$0xf]
    %vm66 = vcmask 31744
    %v68 = vsel %vm66, %v65, 0
    %vm70 = vcmask 1041408
    %v71 = vsel %vm70, %v61, 0
    %v74 = vsel %vm70, %v56, 0
    %76 = vmatprep.subr.bf16.mxu0 %v74
    %77 = vmatpush1.bf16.msra.mxu0 %v71
    %78 = vmatprep.subr.bf16.mxu0 0
    %79 = vmatpush1.bf16.msra.mxu0 0
    %80 = vmatprep.subr.bf16.mxu0 0
    %81 = vmatpush1.bf16.msra.mxu0 0
    %82 = vmatprep.subr.bf16.mxu0 0
    %83 = vmatpush1.bf16.msra.mxu0 0
    %84 = vmatprep.subr.bf16.mxu0 0
    %85 = vmatpush1.bf16.msra.mxu0 0
    %86 = vmatprep.subr.bf16.mxu0 0
    %87 = vmatpush1.bf16.msra.mxu0 0
    %88 = vmatprep.subr.bf16.mxu0 0
    %89 = vmatpush1.bf16.msra.mxu0 0
    %90 = vmatprep.subr.bf16.mxu0 0
    %91 = vmatpush1.bf16.msra.mxu0 0
    %92 = vmatprep.subr.bf16.mxu0 0
    %93 = vmatpush1.bf16.msra.mxu0 0
    %94 = vmatprep.subr.bf16.mxu0 0
    %95 = vmatpush1.bf16.msra.mxu0 0
    %96 = vmatprep.subr.bf16.mxu0 0
    %97 = vmatpush1.bf16.msra.mxu0 0
    %98 = vmatprep.subr.bf16.mxu0 0
    %99 = vmatpush1.bf16.msra.mxu0 0
    %100 = vmatprep.subr.bf16.mxu0 0
    %101 = vmatpush1.bf16.msra.mxu0 0
    %102 = vmatprep.subr.bf16.mxu0 0
    %103 = vmatpush1.bf16.msra.mxu0 0
    %104 = vmatprep.subr.bf16.mxu0 0
    %105 = vmatpush1.bf16.msra.mxu0 0
    %106 = vmatprep.subr.bf16.mxu0 0
    %107 = vmatpush1.bf16.msra.mxu0 0
    %108 = vmatprep.mubr.bf16.mxu0 0
    %109 = vmatmul.mubr.bf16.gmra.mrb[0].mxu0 %v68
    %v110 = vpop.f32.mrb[0].mxu0
    %v111 = vadd.f32 0.0, %v110
    %v112 = vpop.f32.mrb[0].mxu0
    %v113 = vadd.f32 0.0, %v112
    %v114 = vpop.f32.mrb[0].mxu0
    %v115 = vpop.f32.mrb[0].mxu0
    %116 = vdwg.mxu0
    %v117 = vsel %vm70, %v64, 0
    %v120 = vsel %vm70, %v57, 0
    %122 = vmatprep.subr.bf16.mxu0 %v120
    %123 = vmatpush1.bf16.msra.mxu0 %v117
    %124 = vmatprep.subr.bf16.mxu0 0
    %125 = vmatpush1.bf16.msra.mxu0 0
    %126 = vmatprep.subr.bf16.mxu0 0
    %127 = vmatpush1.bf16.msra.mxu0 0
    %128 = vmatprep.subr.bf16.mxu0 0
    %129 = vmatpush1.bf16.msra.mxu0 0
    %130 = vmatprep.subr.bf16.mxu0 0
    %131 = vmatpush1.bf16.msra.mxu0 0
    %132 = vmatprep.subr.bf16.mxu0 0
    %133 = vmatpush1.bf16.msra.mxu0 0
    %134 = vmatprep.subr.bf16.mxu0 0
    %135 = vmatpush1.bf16.msra.mxu0 0
    %136 = vmatprep.subr.bf16.mxu0 0
    %137 = vmatpush1.bf16.msra.mxu0 0
    %138 = vmatprep.subr.bf16.mxu0 0
    %139 = vmatpush1.bf16.msra.mxu0 0
    %140 = vmatprep.subr.bf16.mxu0 0
    %141 = vmatpush1.bf16.msra.mxu0 0
    %142 = vmatprep.subr.bf16.mxu0 0
    %143 = vmatpush1.bf16.msra.mxu0 0
    %144 = vmatprep.subr.bf16.mxu0 0
    %145 = vmatpush1.bf16.msra.mxu0 0
    %146 = vmatprep.subr.bf16.mxu0 0
    %147 = vmatpush1.bf16.msra.mxu0 0
    %148 = vmatprep.subr.bf16.mxu0 0
    %149 = vmatpush1.bf16.msra.mxu0 0
    %150 = vmatprep.subr.bf16.mxu0 0
    %151 = vmatpush1.bf16.msra.mxu0 0
    %152 = vmatprep.subr.bf16.mxu0 0
    %153 = vmatpush1.bf16.msra.mxu0 0
    %154 = vmatprep.mubr.bf16.mxu0 0
    %155 = vmatmul.mubr.bf16.gmra.mrb[0].mxu0 %v68
    %v156 = vpop.f32.mrb[0].mxu0
    %v157 = vadd.f32 0.0, %v156
    %v158 = vpop.f32.mrb[0].mxu0
    %v159 = vadd.f32 0.0, %v158
    %v160 = vpop.f32.mrb[0].mxu0
    %v161 = vpop.f32.mrb[0].mxu0
    %162 = vdwg.mxu0
    %v163 = vld [vmem:[%s2] sm:$0x3]
    %v165 = vlaneseq
    %v166 = vshrl.u32 %v165, 7
    %v167 = vsub.s32 0, %v166
    %v168 = vrot.slane %v163, %v167
    %v169 = vlaneseq
    %v170 = vshrl.u32 %v169, 7
    %v171 = vsub.s32 1, %v170
    %v172 = vrot.slane %v163, %v171
    %v175 = vmul.f32 %v111, %v168
    %v176 = vmul.f32 %v113, %v172
    %v177 = vmul.f32 %v157, %v168
    %v178 = vmul.f32 %v159, %v172
    %v180 = vsel %vm66, %v28, 0
    %v183 = vsel %vm70, %v37, 0
    %v186 = vsel %vm70, %v38, 0
    %188 = vmatprep.subr.bf16.mxu0 %v186
    %189 = vmatpush1.bf16.msra.mxu0 %v183
    %190 = vmatprep.subr.bf16.mxu0 0
    %191 = vmatpush1.bf16.msra.mxu0 0
    %192 = vmatprep.subr.bf16.mxu0 0
    %193 = vmatpush1.bf16.msra.mxu0 0
    %194 = vmatprep.subr.bf16.mxu0 0
    %195 = vmatpush1.bf16.msra.mxu0 0
    %196 = vmatprep.subr.bf16.mxu0 0
    %197 = vmatpush1.bf16.msra.mxu0 0
    %198 = vmatprep.subr.bf16.mxu0 0
    %199 = vmatpush1.bf16.msra.mxu0 0
    %200 = vmatprep.subr.bf16.mxu0 0
    %201 = vmatpush1.bf16.msra.mxu0 0
    %202 = vmatprep.subr.bf16.mxu0 0
    %203 = vmatpush1.bf16.msra.mxu0 0
    %204 = vmatprep.subr.bf16.mxu0 0
    %205 = vmatpush1.bf16.msra.mxu0 0
    %206 = vmatprep.subr.bf16.mxu0 0
    %207 = vmatpush1.bf16.msra.mxu0 0
    %208 = vmatprep.subr.bf16.mxu0 0
    %209 = vmatpush1.bf16.msra.mxu0 0
    %210 = vmatprep.subr.bf16.mxu0 0
    %211 = vmatpush1.bf16.msra.mxu0 0
    %212 = vmatprep.subr.bf16.mxu0 0
    %213 = vmatpush1.bf16.msra.mxu0 0
    %214 = vmatprep.subr.bf16.mxu0 0
    %215 = vmatpush1.bf16.msra.mxu0 0
    %216 = vmatprep.subr.bf16.mxu0 0
    %217 = vmatpush1.bf16.msra.mxu0 0
    %218 = vmatprep.subr.bf16.mxu0 0
    %219 = vmatpush1.bf16.msra.mxu0 0
    %220 = vmatprep.mubr.bf16.mxu0 0
    %221 = vmatmul.mubr.bf16.gmra.mrb[0].mxu0 %v180
    %v222 = vpop.f32.mrb[0].mxu0
    %v223 = vadd.f32 %v175, %v222
    %v224 = vpop.f32.mrb[0].mxu0
    %v225 = vadd.f32 %v176, %v224
    %v226 = vpop.f32.mrb[0].mxu0
    %v227 = vpop.f32.mrb[0].mxu0
    %228 = vdwg.mxu0
    %v230 = vsel %vm70, %v45, 0
    %v233 = vsel %vm70, %v46, 0
    %235 = vmatprep.subr.bf16.mxu0 %v233
    %236 = vmatpush1.bf16.msra.mxu0 %v230
    %237 = vmatprep.subr.bf16.mxu0 0
    %238 = vmatpush1.bf16.msra.mxu0 0
    %239 = vmatprep.subr.bf16.mxu0 0
    %240 = vmatpush1.bf16.msra.mxu0 0
    %241 = vmatprep.subr.bf16.mxu0 0
    %242 = vmatpush1.bf16.msra.mxu0 0
    %243 = vmatprep.subr.bf16.mxu0 0
    %244 = vmatpush1.bf16.msra.mxu0 0
    %245 = vmatprep.subr.bf16.mxu0 0
    %246 = vmatpush1.bf16.msra.mxu0 0
    %247 = vmatprep.subr.bf16.mxu0 0
    %248 = vmatpush1.bf16.msra.mxu0 0
    %249 = vmatprep.subr.bf16.mxu0 0
    %250 = vmatpush1.bf16.msra.mxu0 0
    %251 = vmatprep.subr.bf16.mxu0 0
    %252 = vmatpush1.bf16.msra.mxu0 0
    %253 = vmatprep.subr.bf16.mxu0 0
    %254 = vmatpush1.bf16.msra.mxu0 0
    %255 = vmatprep.subr.bf16.mxu0 0
    %256 = vmatpush1.bf16.msra.mxu0 0
    %257 = vmatprep.subr.bf16.mxu0 0
    %258 = vmatpush1.bf16.msra.mxu0 0
    %259 = vmatprep.subr.bf16.mxu0 0
    %260 = vmatpush1.bf16.msra.mxu0 0
    %261 = vmatprep.subr.bf16.mxu0 0
    %262 = vmatpush1.bf16.msra.mxu0 0
    %263 = vmatprep.subr.bf16.mxu0 0
    %264 = vmatpush1.bf16.msra.mxu0 0
    %265 = vmatprep.subr.bf16.mxu0 0
    %266 = vmatpush1.bf16.msra.mxu0 0
    %267 = vmatprep.mubr.bf16.mxu0 0
    %268 = vmatmul.mubr.bf16.gmra.mrb[0].mxu0 %v180
    %v269 = vpop.f32.mrb[0].mxu0
    %v270 = vadd.f32 %v177, %v269
    %v271 = vpop.f32.mrb[0].mxu0
    %v272 = vadd.f32 %v178, %v271
    %v273 = vpop.f32.mrb[0].mxu0
    %v274 = vpop.f32.mrb[0].mxu0
    %275 = vdwg.mxu0
    %276 = vrot.lane.b32.xlu0 %v38, 16
    %v277 = vpop.permute.xlu0 %276
    %278 = vrot.lane.b32.xlu0 %v46, 16
    %v279 = vpop.permute.xlu0 %278
    %280 = vrot.lane.b32.xlu0 %v37, 16
    %v281 = vpop.permute.xlu0 %280
    %282 = vrot.lane.b32.xlu0 %v45, 16
    %v283 = vpop.permute.xlu0 %282
    %vm284 = vcmask 130048
    %v285 = vsel %vm284, %v281, %v277
    %v286 = vsel %vm284, %v283, %v279
    %vm287 = vcmask 130048
    %v290 = vsel %vm287, %v277, %v281
    %v293 = vsel %vm287, %v279, %v283
    %s294 = scalar_lea.vmem %s1, 4
    %v295 = vld [vmem:[%s294] sm:$0xf]
    %v297 = vsel %vm66, %v295, 0
    %v299 = vsel %vm70, %v290, 0
    %v302 = vsel %vm70, %v285, 0
    %304 = vmatprep.subr.bf16.mxu0 %v302
    %305 = vmatpush1.bf16.msra.mxu0 %v299
    %306 = vmatprep.subr.bf16.mxu0 0
    %307 = vmatpush1.bf16.msra.mxu0 0
    %308 = vmatprep.subr.bf16.mxu0 0
    %309 = vmatpush1.bf16.msra.mxu0 0
    %310 = vmatprep.subr.bf16.mxu0 0
    %311 = vmatpush1.bf16.msra.mxu0 0
    %312 = vmatprep.subr.bf16.mxu0 0
    %313 = vmatpush1.bf16.msra.mxu0 0
    %314 = vmatprep.subr.bf16.mxu0 0
    %315 = vmatpush1.bf16.msra.mxu0 0
    %316 = vmatprep.subr.bf16.mxu0 0
    %317 = vmatpush1.bf16.msra.mxu0 0
    %318 = vmatprep.subr.bf16.mxu0 0
    %319 = vmatpush1.bf16.msra.mxu0 0
    %320 = vmatprep.subr.bf16.mxu0 0
    %321 = vmatpush1.bf16.msra.mxu0 0
    %322 = vmatprep.subr.bf16.mxu0 0
    %323 = vmatpush1.bf16.msra.mxu0 0
    %324 = vmatprep.subr.bf16.mxu0 0
    %325 = vmatpush1.bf16.msra.mxu0 0
    %326 = vmatprep.subr.bf16.mxu0 0
    %327 = vmatpush1.bf16.msra.mxu0 0
    %328 = vmatprep.subr.bf16.mxu0 0
    %329 = vmatpush1.bf16.msra.mxu0 0
    %330 = vmatprep.subr.bf16.mxu0 0
    %331 = vmatpush1.bf16.msra.mxu0 0
    %332 = vmatprep.subr.bf16.mxu0 0
    %333 = vmatpush1.bf16.msra.mxu0 0
    %334 = vmatprep.subr.bf16.mxu0 0
    %335 = vmatpush1.bf16.msra.mxu0 0
    %336 = vmatprep.mubr.bf16.mxu0 0
    %337 = vmatmul.mubr.bf16.gmra.mrb[0].mxu0 %v297
    %v338 = vpop.f32.mrb[0].mxu0
    %v339 = vadd.f32 0.0, %v338
    %v340 = vpop.f32.mrb[0].mxu0
    %v341 = vadd.f32 0.0, %v340
    %v342 = vpop.f32.mrb[0].mxu0
    %v343 = vpop.f32.mrb[0].mxu0
    %344 = vdwg.mxu0
    %v345 = vsel %vm70, %v293, 0
    %v348 = vsel %vm70, %v286, 0
    %350 = vmatprep.subr.bf16.mxu0 %v348
    %351 = vmatpush1.bf16.msra.mxu0 %v345
    %352 = vmatprep.subr.bf16.mxu0 0
    %353 = vmatpush1.bf16.msra.mxu0 0
    %354 = vmatprep.subr.bf16.mxu0 0
    %355 = vmatpush1.bf16.msra.mxu0 0
    %356 = vmatprep.subr.bf16.mxu0 0
    %357 = vmatpush1.bf16.msra.mxu0 0
    %358 = vmatprep.subr.bf16.mxu0 0
    %359 = vmatpush1.bf16.msra.mxu0 0
    %360 = vmatprep.subr.bf16.mxu0 0
    %361 = vmatpush1.bf16.msra.mxu0 0
    %362 = vmatprep.subr.bf16.mxu0 0
    %363 = vmatpush1.bf16.msra.mxu0 0
    %364 = vmatprep.subr.bf16.mxu0 0
    %365 = vmatpush1.bf16.msra.mxu0 0
    %366 = vmatprep.subr.bf16.mxu0 0
    %367 = vmatpush1.bf16.msra.mxu0 0
    %368 = vmatprep.subr.bf16.mxu0 0
    %369 = vmatpush1.bf16.msra.mxu0 0
    %370 = vmatprep.subr.bf16.mxu0 0
    %371 = vmatpush1.bf16.msra.mxu0 0
    %372 = vmatprep.subr.bf16.mxu0 0
    %373 = vmatpush1.bf16.msra.mxu0 0
    %374 = vmatprep.subr.bf16.mxu0 0
    %375 = vmatpush1.bf16.msra.mxu0 0
    %376 = vmatprep.subr.bf16.mxu0 0
    %377 = vmatpush1.bf16.msra.mxu0 0
    %378 = vmatprep.subr.bf16.mxu0 0
    %379 = vmatpush1.bf16.msra.mxu0 0
    %380 = vmatprep.subr.bf16.mxu0 0
    %381 = vmatpush1.bf16.msra.mxu0 0
    %382 = vmatprep.mubr.bf16.mxu0 0
    %383 = vmatmul.mubr.bf16.gmra.mrb[0].mxu0 %v297
    %v384 = vpop.f32.mrb[0].mxu0
    %v385 = vadd.f32 0.0, %v384
    %v386 = vpop.f32.mrb[0].mxu0
    %v387 = vadd.f32 0.0, %v386
    %v388 = vpop.f32.mrb[0].mxu0
    %v389 = vpop.f32.mrb[0].mxu0
    %390 = vdwg.mxu0
    %s391 = scalar_lea.vmem %s2, 2
    %v392 = vld [vmem:[%s391] sm:$0x3]
    %v394 = vlaneseq
    %v395 = vshrl.u32 %v394, 7
    %v396 = vsub.s32 0, %v395
    %v397 = vrot.slane %v392, %v396
    %v398 = vlaneseq
    %v399 = vshrl.u32 %v398, 7
    %v400 = vsub.s32 1, %v399
    %v401 = vrot.slane %v392, %v400
    %v404 = vmul.f32 %v339, %v397
    %v405 = vmul.f32 %v341, %v401
    %v406 = vmul.f32 %v385, %v397
    %v407 = vmul.f32 %v387, %v401
    %v408 = vadd.f32 %v223, %v404
    %v409 = vadd.f32 %v225, %v405
    %v410 = vadd.f32 %v270, %v406
    %v411 = vadd.f32 %v272, %v407
    %412 = vrot.lane.b32.xlu0 %v38, 15
    %v413 = vpop.permute.xlu0 %412
    %414 = vrot.lane.b32.xlu0 %v46, 15
    %v415 = vpop.permute.xlu0 %414
    %416 = vrot.lane.b32.xlu0 %v37, 15
    %v417 = vpop.permute.xlu0 %416
    %418 = vrot.lane.b32.xlu0 %v45, 15
    %v419 = vpop.permute.xlu0 %418
    %vm420 = vcmask 121856
    %v421 = vsel %vm420, %v417, %v413
    %v422 = vsel %vm420, %v419, %v415
    %vm423 = vcmask 121856
    %v426 = vsel %vm423, %v413, %v417
    %v429 = vsel %vm423, %v415, %v419
    %s430 = scalar_lea.vmem %s1, 8
    %v431 = vld [vmem:[%s430] sm:$0xf]
    %v433 = vsel %vm66, %v431, 0
    %v435 = vsel %vm70, %v426, 0
    %v438 = vsel %vm70, %v421, 0
    %440 = vmatprep.subr.bf16.mxu0 %v438
    %441 = vmatpush1.bf16.msra.mxu0 %v435
    %442 = vmatprep.subr.bf16.mxu0 0
    %443 = vmatpush1.bf16.msra.mxu0 0
    %444 = vmatprep.subr.bf16.mxu0 0
    %445 = vmatpush1.bf16.msra.mxu0 0
    %446 = vmatprep.subr.bf16.mxu0 0
    %447 = vmatpush1.bf16.msra.mxu0 0
    %448 = vmatprep.subr.bf16.mxu0 0
    %449 = vmatpush1.bf16.msra.mxu0 0
    %450 = vmatprep.subr.bf16.mxu0 0
    %451 = vmatpush1.bf16.msra.mxu0 0
    %452 = vmatprep.subr.bf16.mxu0 0
    %453 = vmatpush1.bf16.msra.mxu0 0
    %454 = vmatprep.subr.bf16.mxu0 0
    %455 = vmatpush1.bf16.msra.mxu0 0
    %456 = vmatprep.subr.bf16.mxu0 0
    %457 = vmatpush1.bf16.msra.mxu0 0
    %458 = vmatprep.subr.bf16.mxu0 0
    %459 = vmatpush1.bf16.msra.mxu0 0
    %460 = vmatprep.subr.bf16.mxu0 0
    %461 = vmatpush1.bf16.msra.mxu0 0
    %462 = vmatprep.subr.bf16.mxu0 0
    %463 = vmatpush1.bf16.msra.mxu0 0
    %464 = vmatprep.subr.bf16.mxu0 0
    %465 = vmatpush1.bf16.msra.mxu0 0
    %466 = vmatprep.subr.bf16.mxu0 0
    %467 = vmatpush1.bf16.msra.mxu0 0
    %468 = vmatprep.subr.bf16.mxu0 0
    %469 = vmatpush1.bf16.msra.mxu0 0
    %470 = vmatprep.subr.bf16.mxu0 0
    %471 = vmatpush1.bf16.msra.mxu0 0
    %472 = vmatprep.mubr.bf16.mxu0 0
    %473 = vmatmul.mubr.bf16.gmra.mrb[0].mxu0 %v433
    %v474 = vpop.f32.mrb[0].mxu0
    %v475 = vadd.f32 0.0, %v474
    %v476 = vpop.f32.mrb[0].mxu0
    %v477 = vadd.f32 0.0, %v476
    %v478 = vpop.f32.mrb[0].mxu0
    %v479 = vpop.f32.mrb[0].mxu0
    %480 = vdwg.mxu0
    %v481 = vsel %vm70, %v429, 0
    %v484 = vsel %vm70, %v422, 0
    %486 = vmatprep.subr.bf16.mxu0 %v484
    %487 = vmatpush1.bf16.msra.mxu0 %v481
    %488 = vmatprep.subr.bf16.mxu0 0
    %489 = vmatpush1.bf16.msra.mxu0 0
    %490 = vmatprep.subr.bf16.mxu0 0
    %491 = vmatpush1.bf16.msra.mxu0 0
    %492 = vmatprep.subr.bf16.mxu0 0
    %493 = vmatpush1.bf16.msra.mxu0 0
    %494 = vmatprep.subr.bf16.mxu0 0
    %495 = vmatpush1.bf16.msra.mxu0 0
    %496 = vmatprep.subr.bf16.mxu0 0
    %497 = vmatpush1.bf16.msra.mxu0 0
    %498 = vmatprep.subr.bf16.mxu0 0
    %499 = vmatpush1.bf16.msra.mxu0 0
    %500 = vmatprep.subr.bf16.mxu0 0
    %501 = vmatpush1.bf16.msra.mxu0 0
    %502 = vmatprep.subr.bf16.mxu0 0
    %503 = vmatpush1.bf16.msra.mxu0 0
    %504 = vmatprep.subr.bf16.mxu0 0
    %505 = vmatpush1.bf16.msra.mxu0 0
    %506 = vmatprep.subr.bf16.mxu0 0
    %507 = vmatpush1.bf16.msra.mxu0 0
    %508 = vmatprep.subr.bf16.mxu0 0
    %509 = vmatpush1.bf16.msra.mxu0 0
    %510 = vmatprep.subr.bf16.mxu0 0
    %511 = vmatpush1.bf16.msra.mxu0 0
    %512 = vmatprep.subr.bf16.mxu0 0
    %513 = vmatpush1.bf16.msra.mxu0 0
    %514 = vmatprep.subr.bf16.mxu0 0
    %515 = vmatpush1.bf16.msra.mxu0 0
    %516 = vmatprep.subr.bf16.mxu0 0
    %517 = vmatpush1.bf16.msra.mxu0 0
    %518 = vmatprep.mubr.bf16.mxu0 0
    %519 = vmatmul.mubr.bf16.gmra.mrb[0].mxu0 %v433
    %v520 = vpop.f32.mrb[0].mxu0
    %v521 = vadd.f32 0.0, %v520
    %v522 = vpop.f32.mrb[0].mxu0
    %v523 = vadd.f32 0.0, %v522
    %v524 = vpop.f32.mrb[0].mxu0
    %v525 = vpop.f32.mrb[0].mxu0
    %526 = vdwg.mxu0
    %s527 = scalar_lea.vmem %s2, 4
    %v528 = vld [vmem:[%s527] sm:$0x3]
    %v530 = vlaneseq
    %v531 = vshrl.u32 %v530, 7
    %v532 = vsub.s32 0, %v531
    %v533 = vrot.slane %v528, %v532
    %v534 = vlaneseq
    %v535 = vshrl.u32 %v534, 7
    %v536 = vsub.s32 1, %v535
    %v537 = vrot.slane %v528, %v536
    %v540 = vmul.f32 %v475, %v533
    %v541 = vmul.f32 %v477, %v537
    %v542 = vmul.f32 %v521, %v533
    %v543 = vmul.f32 %v523, %v537
    %v544 = vadd.f32 %v408, %v540
    %v545 = vadd.f32 %v409, %v541
    %v546 = vadd.f32 %v410, %v542
    %v547 = vadd.f32 %v411, %v543
    %548 = vrot.lane.b32.xlu0 %v38, 1
    %v549 = vpop.permute.xlu0 %548
    %550 = vrot.lane.b32.xlu0 %v46, 1
    %v551 = vpop.permute.xlu0 %550
    %552 = vrot.lane.b32.xlu0 %v37, 1
    %v553 = vpop.permute.xlu0 %552
    %554 = vrot.lane.b32.xlu0 %v45, 1
    %v555 = vpop.permute.xlu0 %554
    %vm556 = vcmask 7168
    %v557 = vsel %vm556, %v553, %v549
    %v558 = vsel %vm556, %v555, %v551
    %vm559 = vcmask 7168
    %v562 = vsel %vm559, %v549, %v553
    %v565 = vsel %vm559, %v551, %v555
    %s566 = scalar_lea.vmem %s1, 12
    %v567 = vld [vmem:[%s566] sm:$0xf]
    %v569 = vsel %vm66, %v567, 0
    %v571 = vsel %vm70, %v562, 0
    %v574 = vsel %vm70, %v557, 0
    %576 = vmatprep.subr.bf16.mxu0 %v574
    %577 = vmatpush1.bf16.msra.mxu0 %v571
    %578 = vmatprep.subr.bf16.mxu0 0
    %579 = vmatpush1.bf16.msra.mxu0 0
    %580 = vmatprep.subr.bf16.mxu0 0
    %581 = vmatpush1.bf16.msra.mxu0 0
    %582 = vmatprep.subr.bf16.mxu0 0
    %583 = vmatpush1.bf16.msra.mxu0 0
    %584 = vmatprep.subr.bf16.mxu0 0
    %585 = vmatpush1.bf16.msra.mxu0 0
    %586 = vmatprep.subr.bf16.mxu0 0
    %587 = vmatpush1.bf16.msra.mxu0 0
    %588 = vmatprep.subr.bf16.mxu0 0
    %589 = vmatpush1.bf16.msra.mxu0 0
    %590 = vmatprep.subr.bf16.mxu0 0
    %591 = vmatpush1.bf16.msra.mxu0 0
    %592 = vmatprep.subr.bf16.mxu0 0
    %593 = vmatpush1.bf16.msra.mxu0 0
    %594 = vmatprep.subr.bf16.mxu0 0
    %595 = vmatpush1.bf16.msra.mxu0 0
    %596 = vmatprep.subr.bf16.mxu0 0
    %597 = vmatpush1.bf16.msra.mxu0 0
    %598 = vmatprep.subr.bf16.mxu0 0
    %599 = vmatpush1.bf16.msra.mxu0 0
    %600 = vmatprep.subr.bf16.mxu0 0
    %601 = vmatpush1.bf16.msra.mxu0 0
    %602 = vmatprep.subr.bf16.mxu0 0
    %603 = vmatpush1.bf16.msra.mxu0 0
    %604 = vmatprep.subr.bf16.mxu0 0
    %605 = vmatpush1.bf16.msra.mxu0 0
    %606 = vmatprep.subr.bf16.mxu0 0
    %607 = vmatpush1.bf16.msra.mxu0 0
    %608 = vmatprep.mubr.bf16.mxu0 0
    %609 = vmatmul.mubr.bf16.gmra.mrb[0].mxu0 %v569
    %v610 = vpop.f32.mrb[0].mxu0
    %v611 = vadd.f32 0.0, %v610
    %v612 = vpop.f32.mrb[0].mxu0
    %v613 = vadd.f32 0.0, %v612
    %v614 = vpop.f32.mrb[0].mxu0
    %v615 = vpop.f32.mrb[0].mxu0
    %616 = vdwg.mxu0
    %v617 = vsel %vm70, %v565, 0
    %v620 = vsel %vm70, %v558, 0
    %622 = vmatprep.subr.bf16.mxu0 %v620
    %623 = vmatpush1.bf16.msra.mxu0 %v617
    %624 = vmatprep.subr.bf16.mxu0 0
    %625 = vmatpush1.bf16.msra.mxu0 0
    %626 = vmatprep.subr.bf16.mxu0 0
    %627 = vmatpush1.bf16.msra.mxu0 0
    %628 = vmatprep.subr.bf16.mxu0 0
    %629 = vmatpush1.bf16.msra.mxu0 0
    %630 = vmatprep.subr.bf16.mxu0 0
    %631 = vmatpush1.bf16.msra.mxu0 0
    %632 = vmatprep.subr.bf16.mxu0 0
    %633 = vmatpush1.bf16.msra.mxu0 0
    %634 = vmatprep.subr.bf16.mxu0 0
    %635 = vmatpush1.bf16.msra.mxu0 0
    %636 = vmatprep.subr.bf16.mxu0 0
    %637 = vmatpush1.bf16.msra.mxu0 0
    %638 = vmatprep.subr.bf16.mxu0 0
    %639 = vmatpush1.bf16.msra.mxu0 0
    %640 = vmatprep.subr.bf16.mxu0 0
    %641 = vmatpush1.bf16.msra.mxu0 0
    %642 = vmatprep.subr.bf16.mxu0 0
    %643 = vmatpush1.bf16.msra.mxu0 0
    %644 = vmatprep.subr.bf16.mxu0 0
    %645 = vmatpush1.bf16.msra.mxu0 0
    %646 = vmatprep.subr.bf16.mxu0 0
    %647 = vmatpush1.bf16.msra.mxu0 0
    %648 = vmatprep.subr.bf16.mxu0 0
    %649 = vmatpush1.bf16.msra.mxu0 0
    %650 = vmatprep.subr.bf16.mxu0 0
    %651 = vmatpush1.bf16.msra.mxu0 0
    %652 = vmatprep.subr.bf16.mxu0 0
    %653 = vmatpush1.bf16.msra.mxu0 0
    %654 = vmatprep.mubr.bf16.mxu0 0
    %655 = vmatmul.mubr.bf16.gmra.mrb[0].mxu0 %v569
    %v656 = vpop.f32.mrb[0].mxu0
    %v657 = vadd.f32 0.0, %v656
    %v658 = vpop.f32.mrb[0].mxu0
    %v659 = vadd.f32 0.0, %v658
    %v660 = vpop.f32.mrb[0].mxu0
    %v661 = vpop.f32.mrb[0].mxu0
    %662 = vdwg.mxu0
    %s663 = scalar_lea.vmem %s2, 6
    %v664 = vld [vmem:[%s663] sm:$0x3]
    %v666 = vlaneseq
    %v667 = vshrl.u32 %v666, 7
    %v668 = vsub.s32 0, %v667
    %v669 = vrot.slane %v664, %v668
    %v670 = vlaneseq
    %v671 = vshrl.u32 %v670, 7
    %v672 = vsub.s32 1, %v671
    %v673 = vrot.slane %v664, %v672
    %v676 = vmul.f32 %v611, %v669
    %v677 = vmul.f32 %v613, %v673
    %v678 = vmul.f32 %v657, %v669
    %v679 = vmul.f32 %v659, %v673
    %v680 = vadd.f32 %v544, %v676
    %v681 = vadd.f32 %v545, %v677
    %v682 = vadd.f32 %v546, %v678
    %v683 = vadd.f32 %v547, %v679
    %684 = vrot.lane.b32.xlu0 %v37, 127
    %v685 = vpop.permute.xlu0 %684
    %686 = vrot.lane.b32.xlu0 %v38, 127
    %v687 = vpop.permute.xlu0 %686
    %688 = vrot.lane.b32.xlu0 %v45, 127
    %v689 = vpop.permute.xlu0 %688
    %690 = vrot.lane.b32.xlu0 %v46, 127
    %v691 = vpop.permute.xlu0 %690
    %vm692 = vcmask 1039360
    %v693 = vsel %vm692, %v685, %v687
    %v694 = vsel %vm692, %v689, %v691
    %vm695 = vcmask 1039360
    %v698 = vsel %vm695, %v687, %v685
    %v701 = vsel %vm695, %v691, %v689
    %s702 = scalar_lea.vmem %s1, 20
    %v703 = vld [vmem:[%s702] sm:$0xf]
    %v705 = vsel %vm66, %v703, 0
    %v708 = vsel %vm70, %v693, 0
    %v710 = vsel %vm70, %v698, 0
    %712 = vmatprep.subr.bf16.mxu0 %v710
    %713 = vmatpush1.bf16.msra.mxu0 %v708
    %714 = vmatprep.subr.bf16.mxu0 0
    %715 = vmatpush1.bf16.msra.mxu0 0
    %716 = vmatprep.subr.bf16.mxu0 0
    %717 = vmatpush1.bf16.msra.mxu0 0
    %718 = vmatprep.subr.bf16.mxu0 0
    %719 = vmatpush1.bf16.msra.mxu0 0
    %720 = vmatprep.subr.bf16.mxu0 0
    %721 = vmatpush1.bf16.msra.mxu0 0
    %722 = vmatprep.subr.bf16.mxu0 0
    %723 = vmatpush1.bf16.msra.mxu0 0
    %724 = vmatprep.subr.bf16.mxu0 0
    %725 = vmatpush1.bf16.msra.mxu0 0
    %726 = vmatprep.subr.bf16.mxu0 0
    %727 = vmatpush1.bf16.msra.mxu0 0
    %728 = vmatprep.subr.bf16.mxu0 0
    %729 = vmatpush1.bf16.msra.mxu0 0
    %730 = vmatprep.subr.bf16.mxu0 0
    %731 = vmatpush1.bf16.msra.mxu0 0
    %732 = vmatprep.subr.bf16.mxu0 0
    %733 = vmatpush1.bf16.msra.mxu0 0
    %734 = vmatprep.subr.bf16.mxu0 0
    %735 = vmatpush1.bf16.msra.mxu0 0
    %736 = vmatprep.subr.bf16.mxu0 0
    %737 = vmatpush1.bf16.msra.mxu0 0
    %738 = vmatprep.subr.bf16.mxu0 0
    %739 = vmatpush1.bf16.msra.mxu0 0
    %740 = vmatprep.subr.bf16.mxu0 0
    %741 = vmatpush1.bf16.msra.mxu0 0
    %742 = vmatprep.subr.bf16.mxu0 0
    %743 = vmatpush1.bf16.msra.mxu0 0
    %744 = vmatprep.mubr.bf16.mxu0 0
    %745 = vmatmul.mubr.bf16.gmra.mrb[0].mxu0 %v705
    %v746 = vpop.f32.mrb[0].mxu0
    %v747 = vadd.f32 0.0, %v746
    %v748 = vpop.f32.mrb[0].mxu0
    %v749 = vadd.f32 0.0, %v748
    %v750 = vpop.f32.mrb[0].mxu0
    %v751 = vpop.f32.mrb[0].mxu0
    %752 = vdwg.mxu0
    %v754 = vsel %vm70, %v694, 0
    %v756 = vsel %vm70, %v701, 0
    %758 = vmatprep.subr.bf16.mxu0 %v756
    %759 = vmatpush1.bf16.msra.mxu0 %v754
    %760 = vmatprep.subr.bf16.mxu0 0
    %761 = vmatpush1.bf16.msra.mxu0 0
    %762 = vmatprep.subr.bf16.mxu0 0
    %763 = vmatpush1.bf16.msra.mxu0 0
    %764 = vmatprep.subr.bf16.mxu0 0
    %765 = vmatpush1.bf16.msra.mxu0 0
    %766 = vmatprep.subr.bf16.mxu0 0
    %767 = vmatpush1.bf16.msra.mxu0 0
    %768 = vmatprep.subr.bf16.mxu0 0
    %769 = vmatpush1.bf16.msra.mxu0 0
    %770 = vmatprep.subr.bf16.mxu0 0
    %771 = vmatpush1.bf16.msra.mxu0 0
    %772 = vmatprep.subr.bf16.mxu0 0
    %773 = vmatpush1.bf16.msra.mxu0 0
    %774 = vmatprep.subr.bf16.mxu0 0
    %775 = vmatpush1.bf16.msra.mxu0 0
    %776 = vmatprep.subr.bf16.mxu0 0
    %777 = vmatpush1.bf16.msra.mxu0 0
    %778 = vmatprep.subr.bf16.mxu0 0
    %779 = vmatpush1.bf16.msra.mxu0 0
    %780 = vmatprep.subr.bf16.mxu0 0
    %781 = vmatpush1.bf16.msra.mxu0 0
    %782 = vmatprep.subr.bf16.mxu0 0
    %783 = vmatpush1.bf16.msra.mxu0 0
    %784 = vmatprep.subr.bf16.mxu0 0
    %785 = vmatpush1.bf16.msra.mxu0 0
    %786 = vmatprep.subr.bf16.mxu0 0
    %787 = vmatpush1.bf16.msra.mxu0 0
    %788 = vmatprep.subr.bf16.mxu0 0
    %789 = vmatpush1.bf16.msra.mxu0 0
    %790 = vmatprep.mubr.bf16.mxu0 0
    %791 = vmatmul.mubr.bf16.gmra.mrb[0].mxu0 %v705
    %v792 = vpop.f32.mrb[0].mxu0
    %v793 = vadd.f32 0.0, %v792
    %v794 = vpop.f32.mrb[0].mxu0
    %v795 = vadd.f32 0.0, %v794
    %v796 = vpop.f32.mrb[0].mxu0
    %v797 = vpop.f32.mrb[0].mxu0
    %798 = vdwg.mxu0
    %s799 = scalar_lea.vmem %s2, 10
    %v800 = vld [vmem:[%s799] sm:$0x3]
    %v802 = vlaneseq
    %v803 = vshrl.u32 %v802, 7
    %v804 = vsub.s32 0, %v803
    %v805 = vrot.slane %v800, %v804
    %v806 = vlaneseq
    %v807 = vshrl.u32 %v806, 7
    %v808 = vsub.s32 1, %v807
    %v809 = vrot.slane %v800, %v808
    %v812 = vmul.f32 %v747, %v805
    %v813 = vmul.f32 %v749, %v809
    %v814 = vmul.f32 %v793, %v805
    %v815 = vmul.f32 %v795, %v809
    %v816 = vadd.f32 %v680, %v812
    %v817 = vadd.f32 %v681, %v813
    %v818 = vadd.f32 %v682, %v814
    %v819 = vadd.f32 %v683, %v815
    %820 = vrot.lane.b32.xlu0 %v37, 113
    %v821 = vpop.permute.xlu0 %820
    %822 = vrot.lane.b32.xlu0 %v38, 113
    %v823 = vpop.permute.xlu0 %822
    %824 = vrot.lane.b32.xlu0 %v45, 113
    %v825 = vpop.permute.xlu0 %824
    %826 = vrot.lane.b32.xlu0 %v46, 113
    %v827 = vpop.permute.xlu0 %826
    %vm828 = vcmask 924672
    %v829 = vsel %vm828, %v821, %v823
    %v830 = vsel %vm828, %v825, %v827
    %vm831 = vcmask 924672
    %v834 = vsel %vm831, %v823, %v821
    %v837 = vsel %vm831, %v827, %v825
    %s838 = scalar_lea.vmem %s1, 24
    %v839 = vld [vmem:[%s838] sm:$0xf]
    %v841 = vsel %vm66, %v839, 0
    %v844 = vsel %vm70, %v829, 0
    %v846 = vsel %vm70, %v834, 0
    %848 = vmatprep.subr.bf16.mxu0 %v846
    %849 = vmatpush1.bf16.msra.mxu0 %v844
    %850 = vmatprep.subr.bf16.mxu0 0
    %851 = vmatpush1.bf16.msra.mxu0 0
    %852 = vmatprep.subr.bf16.mxu0 0
    %853 = vmatpush1.bf16.msra.mxu0 0
    %854 = vmatprep.subr.bf16.mxu0 0
    %855 = vmatpush1.bf16.msra.mxu0 0
    %856 = vmatprep.subr.bf16.mxu0 0
    %857 = vmatpush1.bf16.msra.mxu0 0
    %858 = vmatprep.subr.bf16.mxu0 0
    %859 = vmatpush1.bf16.msra.mxu0 0
    %860 = vmatprep.subr.bf16.mxu0 0
    %861 = vmatpush1.bf16.msra.mxu0 0
    %862 = vmatprep.subr.bf16.mxu0 0
    %863 = vmatpush1.bf16.msra.mxu0 0
    %864 = vmatprep.subr.bf16.mxu0 0
    %865 = vmatpush1.bf16.msra.mxu0 0
    %866 = vmatprep.subr.bf16.mxu0 0
    %867 = vmatpush1.bf16.msra.mxu0 0
    %868 = vmatprep.subr.bf16.mxu0 0
    %869 = vmatpush1.bf16.msra.mxu0 0
    %870 = vmatprep.subr.bf16.mxu0 0
    %871 = vmatpush1.bf16.msra.mxu0 0
    %872 = vmatprep.subr.bf16.mxu0 0
    %873 = vmatpush1.bf16.msra.mxu0 0
    %874 = vmatprep.subr.bf16.mxu0 0
    %875 = vmatpush1.bf16.msra.mxu0 0
    %876 = vmatprep.subr.bf16.mxu0 0
    %877 = vmatpush1.bf16.msra.mxu0 0
    %878 = vmatprep.subr.bf16.mxu0 0
    %879 = vmatpush1.bf16.msra.mxu0 0
    %880 = vmatprep.mubr.bf16.mxu0 0
    %881 = vmatmul.mubr.bf16.gmra.mrb[0].mxu0 %v841
    %v882 = vpop.f32.mrb[0].mxu0
    %v883 = vadd.f32 0.0, %v882
    %v884 = vpop.f32.mrb[0].mxu0
    %v885 = vadd.f32 0.0, %v884
    %v886 = vpop.f32.mrb[0].mxu0
    %v887 = vpop.f32.mrb[0].mxu0
    %888 = vdwg.mxu0
    %v890 = vsel %vm70, %v830, 0
    %v892 = vsel %vm70, %v837, 0
    %894 = vmatprep.subr.bf16.mxu0 %v892
    %895 = vmatpush1.bf16.msra.mxu0 %v890
    %896 = vmatprep.subr.bf16.mxu0 0
    %897 = vmatpush1.bf16.msra.mxu0 0
    %898 = vmatprep.subr.bf16.mxu0 0
    %899 = vmatpush1.bf16.msra.mxu0 0
    %900 = vmatprep.subr.bf16.mxu0 0
    %901 = vmatpush1.bf16.msra.mxu0 0
    %902 = vmatprep.subr.bf16.mxu0 0
    %903 = vmatpush1.bf16.msra.mxu0 0
    %904 = vmatprep.subr.bf16.mxu0 0
    %905 = vmatpush1.bf16.msra.mxu0 0
    %906 = vmatprep.subr.bf16.mxu0 0
    %907 = vmatpush1.bf16.msra.mxu0 0
    %908 = vmatprep.subr.bf16.mxu0 0
    %909 = vmatpush1.bf16.msra.mxu0 0
    %910 = vmatprep.subr.bf16.mxu0 0
    %911 = vmatpush1.bf16.msra.mxu0 0
    %912 = vmatprep.subr.bf16.mxu0 0
    %913 = vmatpush1.bf16.msra.mxu0 0
    %914 = vmatprep.subr.bf16.mxu0 0
    %915 = vmatpush1.bf16.msra.mxu0 0
    %916 = vmatprep.subr.bf16.mxu0 0
    %917 = vmatpush1.bf16.msra.mxu0 0
    %918 = vmatprep.subr.bf16.mxu0 0
    %919 = vmatpush1.bf16.msra.mxu0 0
    %920 = vmatprep.subr.bf16.mxu0 0
    %921 = vmatpush1.bf16.msra.mxu0 0
    %922 = vmatprep.subr.bf16.mxu0 0
    %923 = vmatpush1.bf16.msra.mxu0 0
    %924 = vmatprep.subr.bf16.mxu0 0
    %925 = vmatpush1.bf16.msra.mxu0 0
    %926 = vmatprep.mubr.bf16.mxu0 0
    %927 = vmatmul.mubr.bf16.gmra.mrb[0].mxu0 %v841
    %v928 = vpop.f32.mrb[0].mxu0
    %v929 = vadd.f32 0.0, %v928
    %v930 = vpop.f32.mrb[0].mxu0
    %v931 = vadd.f32 0.0, %v930
    %v932 = vpop.f32.mrb[0].mxu0
    %v933 = vpop.f32.mrb[0].mxu0
    %934 = vdwg.mxu0
    %s935 = scalar_lea.vmem %s2, 12
    %v936 = vld [vmem:[%s935] sm:$0x3]
    %v938 = vlaneseq
    %v939 = vshrl.u32 %v938, 7
    %v940 = vsub.s32 0, %v939
    %v941 = vrot.slane %v936, %v940
    %v942 = vlaneseq
    %v943 = vshrl.u32 %v942, 7
    %v944 = vsub.s32 1, %v943
    %v945 = vrot.slane %v936, %v944
    %v948 = vmul.f32 %v883, %v941
    %v949 = vmul.f32 %v885, %v945
    %v950 = vmul.f32 %v929, %v941
    %v951 = vmul.f32 %v931, %v945
    %v952 = vadd.f32 %v816, %v948
    %v953 = vadd.f32 %v817, %v949
    %v954 = vadd.f32 %v818, %v950
    %v955 = vadd.f32 %v819, %v951
    %956 = vrot.lane.b32.xlu0 %v37, 112
    %v957 = vpop.permute.xlu0 %956
    %958 = vrot.lane.b32.xlu0 %v38, 112
    %v959 = vpop.permute.xlu0 %958
    %960 = vrot.lane.b32.xlu0 %v45, 112
    %v961 = vpop.permute.xlu0 %960
    %962 = vrot.lane.b32.xlu0 %v46, 112
    %v963 = vpop.permute.xlu0 %962
    %vm964 = vcmask 916480
    %v965 = vsel %vm964, %v957, %v959
    %v966 = vsel %vm964, %v961, %v963
    %vm967 = vcmask 916480
    %v970 = vsel %vm967, %v959, %v957
    %v973 = vsel %vm967, %v963, %v961
    %s974 = scalar_lea.vmem %s1, 28
    %v975 = vld [vmem:[%s974] sm:$0xf]
    %v977 = vsel %vm66, %v975, 0
    %v980 = vsel %vm70, %v965, 0
    %v982 = vsel %vm70, %v970, 0
    %984 = vmatprep.subr.bf16.mxu0 %v982
    %985 = vmatpush1.bf16.msra.mxu0 %v980
    %986 = vmatprep.subr.bf16.mxu0 0
    %987 = vmatpush1.bf16.msra.mxu0 0
    %988 = vmatprep.subr.bf16.mxu0 0
    %989 = vmatpush1.bf16.msra.mxu0 0
    %990 = vmatprep.subr.bf16.mxu0 0
    %991 = vmatpush1.bf16.msra.mxu0 0
    %992 = vmatprep.subr.bf16.mxu0 0
    %993 = vmatpush1.bf16.msra.mxu0 0
    %994 = vmatprep.subr.bf16.mxu0 0
    %995 = vmatpush1.bf16.msra.mxu0 0
    %996 = vmatprep.subr.bf16.mxu0 0
    %997 = vmatpush1.bf16.msra.mxu0 0
    %998 = vmatprep.subr.bf16.mxu0 0
    %999 = vmatpush1.bf16.msra.mxu0 0
    %1000 = vmatprep.subr.bf16.mxu0 0
    %1001 = vmatpush1.bf16.msra.mxu0 0
    %1002 = vmatprep.subr.bf16.mxu0 0
    %1003 = vmatpush1.bf16.msra.mxu0 0
    %1004 = vmatprep.subr.bf16.mxu0 0
    %1005 = vmatpush1.bf16.msra.mxu0 0
    %1006 = vmatprep.subr.bf16.mxu0 0
    %1007 = vmatpush1.bf16.msra.mxu0 0
    %1008 = vmatprep.subr.bf16.mxu0 0
    %1009 = vmatpush1.bf16.msra.mxu0 0
    %1010 = vmatprep.subr.bf16.mxu0 0
    %1011 = vmatpush1.bf16.msra.mxu0 0
    %1012 = vmatprep.subr.bf16.mxu0 0
    %1013 = vmatpush1.bf16.msra.mxu0 0
    %1014 = vmatprep.subr.bf16.mxu0 0
    %1015 = vmatpush1.bf16.msra.mxu0 0
    %1016 = vmatprep.mubr.bf16.mxu0 0
    %1017 = vmatmul.mubr.bf16.gmra.mrb[0].mxu0 %v977
    %v1018 = vpop.f32.mrb[0].mxu0
    %v1019 = vadd.f32 0.0, %v1018
    %v1020 = vpop.f32.mrb[0].mxu0
    %v1021 = vadd.f32 0.0, %v1020
    %v1022 = vpop.f32.mrb[0].mxu0
    %v1023 = vpop.f32.mrb[0].mxu0
    %1024 = vdwg.mxu0
    %v1026 = vsel %vm70, %v966, 0
    %v1028 = vsel %vm70, %v973, 0
    %1030 = vmatprep.subr.bf16.mxu0 %v1028
    %1031 = vmatpush1.bf16.msra.mxu0 %v1026
    %1032 = vmatprep.subr.bf16.mxu0 0
    %1033 = vmatpush1.bf16.msra.mxu0 0
    %1034 = vmatprep.subr.bf16.mxu0 0
    %1035 = vmatpush1.bf16.msra.mxu0 0
    %1036 = vmatprep.subr.bf16.mxu0 0
    %1037 = vmatpush1.bf16.msra.mxu0 0
    %1038 = vmatprep.subr.bf16.mxu0 0
    %1039 = vmatpush1.bf16.msra.mxu0 0
    %1040 = vmatprep.subr.bf16.mxu0 0
    %1041 = vmatpush1.bf16.msra.mxu0 0
    %1042 = vmatprep.subr.bf16.mxu0 0
    %1043 = vmatpush1.bf16.msra.mxu0 0
    %1044 = vmatprep.subr.bf16.mxu0 0
    %1045 = vmatpush1.bf16.msra.mxu0 0
    %1046 = vmatprep.subr.bf16.mxu0 0
    %1047 = vmatpush1.bf16.msra.mxu0 0
    %1048 = vmatprep.subr.bf16.mxu0 0
    %1049 = vmatpush1.bf16.msra.mxu0 0
    %1050 = vmatprep.subr.bf16.mxu0 0
    %1051 = vmatpush1.bf16.msra.mxu0 0
    %1052 = vmatprep.subr.bf16.mxu0 0
    %1053 = vmatpush1.bf16.msra.mxu0 0
    %1054 = vmatprep.subr.bf16.mxu0 0
    %1055 = vmatpush1.bf16.msra.mxu0 0
    %1056 = vmatprep.subr.bf16.mxu0 0
    %1057 = vmatpush1.bf16.msra.mxu0 0
    %1058 = vmatprep.subr.bf16.mxu0 0
    %1059 = vmatpush1.bf16.msra.mxu0 0
    %1060 = vmatprep.subr.bf16.mxu0 0
    %1061 = vmatpush1.bf16.msra.mxu0 0
    %1062 = vmatprep.mubr.bf16.mxu0 0
    %1063 = vmatmul.mubr.bf16.gmra.mrb[0].mxu0 %v977
    %v1064 = vpop.f32.mrb[0].mxu0
    %v1065 = vadd.f32 0.0, %v1064
    %v1066 = vpop.f32.mrb[0].mxu0
    %v1067 = vadd.f32 0.0, %v1066
    %v1068 = vpop.f32.mrb[0].mxu0
    %v1069 = vpop.f32.mrb[0].mxu0
    %1070 = vdwg.mxu0
    %s1071 = scalar_lea.vmem %s2, 14
    %v1072 = vld [vmem:[%s1071] sm:$0x3]
    %v1074 = vlaneseq
    %v1075 = vshrl.u32 %v1074, 7
    %v1076 = vsub.s32 0, %v1075
    %v1077 = vrot.slane %v1072, %v1076
    %v1078 = vlaneseq
    %v1079 = vshrl.u32 %v1078, 7
    %v1080 = vsub.s32 1, %v1079
    %v1081 = vrot.slane %v1072, %v1080
    %v1084 = vmul.f32 %v1019, %v1077
    %v1085 = vmul.f32 %v1021, %v1081
    %v1086 = vmul.f32 %v1065, %v1077
    %v1087 = vmul.f32 %v1067, %v1081
    %v1088 = vadd.f32 %v952, %v1084
    %v1089 = vadd.f32 %v953, %v1085
    %v1090 = vadd.f32 %v954, %v1086
    %v1091 = vadd.f32 %v955, %v1087
    %1092 = vrot.lane.b32.xlu0 %v37, 111
    %v1093 = vpop.permute.xlu0 %1092
    %1094 = vrot.lane.b32.xlu0 %v38, 111
    %v1095 = vpop.permute.xlu0 %1094
    %1096 = vrot.lane.b32.xlu0 %v45, 111
    %v1097 = vpop.permute.xlu0 %1096
    %1098 = vrot.lane.b32.xlu0 %v46, 111
    %v1099 = vpop.permute.xlu0 %1098
    %vm1100 = vcmask 908288
    %v1101 = vsel %vm1100, %v1093, %v1095
    %v1102 = vsel %vm1100, %v1097, %v1099
    %vm1103 = vcmask 908288
    %v1106 = vsel %vm1103, %v1095, %v1093
    %v1109 = vsel %vm1103, %v1099, %v1097
    %s1110 = scalar_lea.vmem %s1, 32
    %v1111 = vld [vmem:[%s1110] sm:$0xf]
    %v1113 = vsel %vm66, %v1111, 0
    %v1116 = vsel %vm70, %v1101, 0
    %v1118 = vsel %vm70, %v1106, 0
    %1120 = vmatprep.subr.bf16.mxu0 %v1118
    %1121 = vmatpush1.bf16.msra.mxu0 %v1116
    %1122 = vmatprep.subr.bf16.mxu0 0
    %1123 = vmatpush1.bf16.msra.mxu0 0
    %1124 = vmatprep.subr.bf16.mxu0 0
    %1125 = vmatpush1.bf16.msra.mxu0 0
    %1126 = vmatprep.subr.bf16.mxu0 0
    %1127 = vmatpush1.bf16.msra.mxu0 0
    %1128 = vmatprep.subr.bf16.mxu0 0
    %1129 = vmatpush1.bf16.msra.mxu0 0
    %1130 = vmatprep.subr.bf16.mxu0 0
    %1131 = vmatpush1.bf16.msra.mxu0 0
    %1132 = vmatprep.subr.bf16.mxu0 0
    %1133 = vmatpush1.bf16.msra.mxu0 0
    %1134 = vmatprep.subr.bf16.mxu0 0
    %1135 = vmatpush1.bf16.msra.mxu0 0
    %1136 = vmatprep.subr.bf16.mxu0 0
    %1137 = vmatpush1.bf16.msra.mxu0 0
    %1138 = vmatprep.subr.bf16.mxu0 0
    %1139 = vmatpush1.bf16.msra.mxu0 0
    %1140 = vmatprep.subr.bf16.mxu0 0
    %1141 = vmatpush1.bf16.msra.mxu0 0
    %1142 = vmatprep.subr.bf16.mxu0 0
    %1143 = vmatpush1.bf16.msra.mxu0 0
    %1144 = vmatprep.subr.bf16.mxu0 0
    %1145 = vmatpush1.bf16.msra.mxu0 0
    %1146 = vmatprep.subr.bf16.mxu0 0
    %1147 = vmatpush1.bf16.msra.mxu0 0
    %1148 = vmatprep.subr.bf16.mxu0 0
    %1149 = vmatpush1.bf16.msra.mxu0 0
    %1150 = vmatprep.subr.bf16.mxu0 0
    %1151 = vmatpush1.bf16.msra.mxu0 0
    %1152 = vmatprep.mubr.bf16.mxu0 0
    %1153 = vmatmul.mubr.bf16.gmra.mrb[0].mxu0 %v1113
    %v1154 = vpop.f32.mrb[0].mxu0
    %v1155 = vadd.f32 0.0, %v1154
    %v1156 = vpop.f32.mrb[0].mxu0
    %v1157 = vadd.f32 0.0, %v1156
    %v1158 = vpop.f32.mrb[0].mxu0
    %v1159 = vpop.f32.mrb[0].mxu0
    %1160 = vdwg.mxu0
    %v1162 = vsel %vm70, %v1102, 0
    %v1164 = vsel %vm70, %v1109, 0
    %1166 = vmatprep.subr.bf16.mxu0 %v1164
    %1167 = vmatpush1.bf16.msra.mxu0 %v1162
    %1168 = vmatprep.subr.bf16.mxu0 0
    %1169 = vmatpush1.bf16.msra.mxu0 0
    %1170 = vmatprep.subr.bf16.mxu0 0
    %1171 = vmatpush1.bf16.msra.mxu0 0
    %1172 = vmatprep.subr.bf16.mxu0 0
    %1173 = vmatpush1.bf16.msra.mxu0 0
    %1174 = vmatprep.subr.bf16.mxu0 0
    %1175 = vmatpush1.bf16.msra.mxu0 0
    %1176 = vmatprep.subr.bf16.mxu0 0
    %1177 = vmatpush1.bf16.msra.mxu0 0
    %1178 = vmatprep.subr.bf16.mxu0 0
    %1179 = vmatpush1.bf16.msra.mxu0 0
    %1180 = vmatprep.subr.bf16.mxu0 0
    %1181 = vmatpush1.bf16.msra.mxu0 0
    %1182 = vmatprep.subr.bf16.mxu0 0
    %1183 = vmatpush1.bf16.msra.mxu0 0
    %1184 = vmatprep.subr.bf16.mxu0 0
    %1185 = vmatpush1.bf16.msra.mxu0 0
    %1186 = vmatprep.subr.bf16.mxu0 0
    %1187 = vmatpush1.bf16.msra.mxu0 0
    %1188 = vmatprep.subr.bf16.mxu0 0
    %1189 = vmatpush1.bf16.msra.mxu0 0
    %1190 = vmatprep.subr.bf16.mxu0 0
    %1191 = vmatpush1.bf16.msra.mxu0 0
    %1192 = vmatprep.subr.bf16.mxu0 0
    %1193 = vmatpush1.bf16.msra.mxu0 0
    %1194 = vmatprep.subr.bf16.mxu0 0
    %1195 = vmatpush1.bf16.msra.mxu0 0
    %1196 = vmatprep.subr.bf16.mxu0 0
    %1197 = vmatpush1.bf16.msra.mxu0 0
    %1198 = vmatprep.mubr.bf16.mxu0 0
    %1199 = vmatmul.mubr.bf16.gmra.mrb[0].mxu0 %v1113
    %v1200 = vpop.f32.mrb[0].mxu0
    %v1201 = vadd.f32 0.0, %v1200
    %v1202 = vpop.f32.mrb[0].mxu0
    %v1203 = vadd.f32 0.0, %v1202
    %v1204 = vpop.f32.mrb[0].mxu0
    %v1205 = vpop.f32.mrb[0].mxu0
    %1206 = vdwg.mxu0
    %s1207 = scalar_lea.vmem %s2, 16
    %v1208 = vld [vmem:[%s1207] sm:$0x3]
    %v1210 = vlaneseq
    %v1211 = vshrl.u32 %v1210, 7
    %v1212 = vsub.s32 0, %v1211
    %v1213 = vrot.slane %v1208, %v1212
    %v1214 = vlaneseq
    %v1215 = vshrl.u32 %v1214, 7
    %v1216 = vsub.s32 1, %v1215
    %v1217 = vrot.slane %v1208, %v1216
    %v1220 = vmul.f32 %v1155, %v1213
    %v1221 = vmul.f32 %v1157, %v1217
    %v1222 = vmul.f32 %v1201, %v1213
    %v1223 = vmul.f32 %v1203, %v1217
    %v1224 = vadd.f32 %v1088, %v1220
    %v1225 = vadd.f32 %v1089, %v1221
    %v1226 = vadd.f32 %v1090, %v1222
    %v1227 = vadd.f32 %v1091, %v1223
    %v1228 = vld [vmem:[%s3] sm:$0xff]
    %1230 = vset.pattern.permute.xlu0 0
    %1231 = vperm.xlu0 %1230, %v1228
    %v1232 = vpop.permute.xlu0 %1231
    %v1234 = vadd.f32 %v1224, %v1232
    %v1235 = vadd.f32 %v1225, %v1232
    %v1236 = vadd.f32 %v1226, %v1232
    %v1237 = vadd.f32 %v1227, %v1232
    %v1238 = vmax.f32 %v1234, 0.0
    %v1239 = vmax.f32 %v1235, 0.0
    %v1240 = vmax.f32 %v1236, 0.0
    %v1241 = vmax.f32 %v1237, 0.0
    %v1242 = vadd.f32 %v1238, %v1239
    %1243 = vadd.xlane.f32.xlu0 %v1242
    %v1244 = vpop.xlane.xlu0 %1243
    %v1245 = vadd.f32 %v1240, %v1241
    %1246 = vadd.xlane.f32.xlu0 %v1245
    %v1247 = vpop.xlane.xlu0 %1246
    %v1248 = vmul.f32 %v1244, 0.00390625
    %v1249 = vmul.f32 %v1247, 0.00390625
    %v1250 = vld [vmem:[%s4] sm:$0xff]
    %v1251 = vld [vmem:[%s5] sm:$0x1]
    %v1253 = vlaneseq
    %v1254 = vshrl.u32 %v1253, 7
    %v1255 = vsub.s32 0, %v1254
    %v1256 = vrot.slane %v1251, %v1255
    %v1260 = vlaneseq
    %v1261 = vand.u32 %v1260, 127
    %v1262 = vlaneseq
    %v1263 = vshrl.u32 %v1262, 7
    %v1264 = vsub.s32 %v1261, %v1263
    %v1265 = vrot.slane %v1248, %v1264
    %v1266 = vlaneseq
    %v1267 = vshrl.u32 %v1266, 7
    %v1268 = vsub.s32 %v1261, %v1267
    %v1269 = vrot.slane %v1249, %v1268
    %vm1270 = vcmask 1041409
    %v1271 = vsel %vm1270, %v1269, %v1265
    %vm1272 = vcmask 64512
    %v1273 = vsel %vm1272, %v1271, 0
    %1275 = vmatprep.subr.mxu0 0.0
    %1276 = vmatpush1.msra.mxu0 %v1250
    %1277 = vmatprep.subr.mxu0 0.0
    %1278 = vmatpush1.msra.mxu0 0.0
    %1279 = vmatprep.subr.mxu0 0.0
    %1280 = vmatpush1.msra.mxu0 0.0
    %1281 = vmatprep.subr.mxu0 0.0
    %1282 = vmatpush1.msra.mxu0 0.0
    %1283 = vmatprep.subr.mxu0 0.0
    %1284 = vmatpush1.msra.mxu0 0.0
    %1285 = vmatprep.subr.mxu0 0.0
    %1286 = vmatpush1.msra.mxu0 0.0
    %1287 = vmatprep.subr.mxu0 0.0
    %1288 = vmatpush1.msra.mxu0 0.0
    %1289 = vmatprep.subr.mxu0 0.0
    %1290 = vmatpush1.msra.mxu0 0.0
    %1291 = vmatprep.subr.mxu0 0.0
    %1292 = vmatpush1.msra.mxu0 0.0
    %1293 = vmatprep.subr.mxu0 0.0
    %1294 = vmatpush1.msra.mxu0 0.0
    %1295 = vmatprep.subr.mxu0 0.0
    %1296 = vmatpush1.msra.mxu0 0.0
    %1297 = vmatprep.subr.mxu0 0.0
    %1298 = vmatpush1.msra.mxu0 0.0
    %1299 = vmatprep.subr.mxu0 0.0
    %1300 = vmatpush1.msra.mxu0 0.0
    %1301 = vmatprep.subr.mxu0 0.0
    %1302 = vmatpush1.msra.mxu0 0.0
    %1303 = vmatprep.subr.mxu0 0.0
    %1304 = vmatpush1.msra.mxu0 0.0
    %1305 = vmatprep.subr.mxu0 0.0
    %1306 = vmatpush1.msra.mxu0 0.0
    %1307 = vmatprep.subr.mxu0 0.0
    %1308 = vmatpush1.msra.mxu0 0.0
    %1309 = vmatprep.subr.mxu0 0.0
    %1310 = vmatpush1.msra.mxu0 0.0
    %1311 = vmatprep.subr.mxu0 0.0
    %1312 = vmatpush1.msra.mxu0 0.0
    %1313 = vmatprep.subr.mxu0 0.0
    %1314 = vmatpush1.msra.mxu0 0.0
    %1315 = vmatprep.subr.mxu0 0.0
    %1316 = vmatpush1.msra.mxu0 0.0
    %1317 = vmatprep.subr.mxu0 0.0
    %1318 = vmatpush1.msra.mxu0 0.0
    %1319 = vmatprep.subr.mxu0 0.0
    %1320 = vmatpush1.msra.mxu0 0.0
    %1321 = vmatprep.subr.mxu0 0.0
    %1322 = vmatpush1.msra.mxu0 0.0
    %1323 = vmatprep.subr.mxu0 0.0
    %1324 = vmatpush1.msra.mxu0 0.0
    %1325 = vmatprep.subr.mxu0 0.0
    %1326 = vmatpush1.msra.mxu0 0.0
    %1327 = vmatprep.subr.mxu0 0.0
    %1328 = vmatpush1.msra.mxu0 0.0
    %1329 = vmatprep.subr.mxu0 0.0
    %1330 = vmatpush1.msra.mxu0 0.0
    %1331 = vmatprep.subr.mxu0 0.0
    %1332 = vmatpush1.msra.mxu0 0.0
    %1333 = vmatprep.subr.mxu0 0.0
    %1334 = vmatpush1.msra.mxu0 0.0
    %1335 = vmatprep.subr.mxu0 0.0
    %1336 = vmatpush1.msra.mxu0 0.0
    %1337 = vmatprep.subr.mxu0 0.0
    %1338 = vmatpush1.msra.mxu0 0.0
    %1339 = vmatprep.mubr.f32.mxu0 0.0
    %1340 = vmatmul.mubr.f32.gmra.mrb[0].mxu0 %v1273
    %v1341 = vpop.f32.mrb[0].mxu0
    %v1342 = vadd.f32 %v1256, %v1341
    %v1343 = vpop.f32.mrb[0].mxu0
    %1344 = vdwg.mxu0
    %1345 = vst [vmem:[#allocation2] sm:$0x3] %v1342
    // Predicated region
    $region26: #{tpu_custom_call.1} parent=1 // pred_check
      _
    $region27: #{tpu_custom_call.1} parent=1 // pred_check_branch
      %1347 = sbr.rel (0) target = $region29
    $region28: #{tpu_custom_call.1} parent=1 // pred_region
      %s1349 = ssub.s32 32, 32
      %1350 = vsyncadd [#allocation3], %s1349
      %s1352 = sshll.u32 [#allocation2], 4
      %s1353 = int_to_ptr.vmem [resolvable:$true] %s1352
      %1355 = dma.vmem_to_hbm [thread:$0]  %s1353, 32, %s6, [#allocation3]
    $region29: #{tpu_custom_call.1} parent=1 // pred_fallthru
      _
    // Predicated region
    $region30: #{tpu_custom_call.1} parent=1 // pred_check
      _
    $region31: #{tpu_custom_call.1} parent=1 // pred_check_branch
      %1357 = sbr.rel (0) target = $region33
    $region32: #{tpu_custom_call.1} parent=1 // pred_region
      %1358 = dma.done [#allocation3], 32
    $region33: #{tpu_custom_call.1} parent=1 // pred_fallthru
      _
    %1359 = vsyncpa [#allocation3], 1

</llo_original>
